<compile_context>
chip_gen: v7x
topology: tpu7x:2x2x1
jax: 0.10.0
libtpu: 0.0.40
codegen_flags: <defaults>
</compile_context>

<pallas_src>
import functools

import jax
import jax.numpy as jnp
from jax.experimental import pallas as pl
from jax.experimental.pallas import tpu as pltpu


def _round_up(x, m):
    return (x + m - 1) // m * m


def _block_diag(*mats):
    rows = sum(m.shape[0] for m in mats)
    cols = sum(m.shape[1] for m in mats)
    out = jnp.zeros((rows, cols), mats[0].dtype)
    r = c = 0
    for m in mats:
        out = out.at[r:r + m.shape[0], c:c + m.shape[1]].set(m)
        r += m.shape[0]
        c += m.shape[1]
    return out


def _pad_to(a, rows, cols):
    return jnp.pad(a, ((0, rows - a.shape[0]), (0, cols - a.shape[1])))


def _sentnet_kernel(pre_stages, need_target_dot, h_pad, cat_pad, out_pad,
                    *refs):
    """One batch tile.

    refs = (a, w_a, [pw], w_cat, [w_tgt], w_red, biases, out)
      a     : (TB, 2*cW + width) packed [c1 | c2 | z]
      w_a   : (2*cW + width, h_pad) block_diag(Wc1, Wc2, Wz), lane-padded
      pw    : (P, h_pad, h_pad) block_diag(p1w_i, p2w_i, I)
      w_cat : (h_pad, cat_pad) stacked [Wd; -Wd(+Wt); Wz_rows]
      w_tgt : (h_pad, cat_pad) [0; Wt; 0]  (only withTarget & preStages>0)
      w_red : (cat_pad, out_pad)
      biases: (3 + P, L) f32
    """
    it = iter(refs)
    a_ref = next(it)
    w_a_ref = next(it)
    pw_ref = next(it) if pre_stages > 0 else None
    w_cat_ref = next(it)
    w_tgt_ref = next(it) if need_target_dot else None
    w_red_ref = next(it)
    b_ref = next(it)
    o_ref = next(it)

    f32 = jnp.float32
    relu = jax.nn.relu
    ball = b_ref[...]                               # (3 + P, L) f32

    def dot(x, w):
        # Cast the activation to the weight dtype (bf16 on v6e/v7x MXU) only
        # at the matmul boundary; accumulate in f32.
        return jnp.dot(x.astype(w.dtype), w, preferred_element_type=f32)

    # [inC1 | inC2 | inZ] from a single block-diagonal matmul (lane-dense).
    h0 = relu(dot(a_ref[...], w_a_ref[...]) + ball[0:1, :h_pad])

    # pre1/pre2 pairs fused per stage; inZ rides along through an identity
    # block (relu is a no-op on it since inZ >= 0).  Static unroll.
    h = h0
    for i in range(pre_stages):
        h = relu(dot(h, pw_ref[i]) + ball[3 + i:4 + i, :h_pad])

    # cat((inC1-inC2, inZ[, target]), 1) @ Wcat folded into packed dot(s).
    x = dot(h, w_cat_ref[...]) + ball[1:2, :cat_pad]
    if need_target_dot:
        x = x + dot(h0, w_tgt_ref[...])
    x = relu(x)

    # reduce (128-lane padded -> unmasked stores) + tanh, emitted as bf16.
    out = jnp.tanh(dot(x, w_red_ref[...]) + ball[2:3, :out_pad])
    o_ref[...] = out.astype(o_ref.dtype)


def sentnet_forward(params, z, c1, c2, *, pre_stages, with_target,
                    compute_dtype=jnp.bfloat16, tile_b=1024,
                    out_dtype=jnp.float32, vmem_limit_bytes=None):
    batch = z.shape[0]
    c_width, in_width = params["wc1"].shape
    width = params["wred"].shape[1]
    two_in = 2 * in_width
    four_in = 4 * in_width
    a_in = 2 * c_width + width               # packed input feature width
    h_pad = _round_up(four_in, 128)          # packed [inC1|inC2|inZ] lanes
    cat_pad = _round_up(two_in, 128)         # cat-stage output lanes
    out_pad = _round_up(width, 128)          # final output lanes
    lanes = max(h_pad, cat_pad, out_pad)     # common bias-buffer lane width
    wdt = compute_dtype
    f32 = jnp.float32
    need_target_dot = with_target and pre_stages > 0

    # ---- stage-1 weight: one block-diagonal matrix -> [inC1 | inC2 | inZ].
    w_a = _pad_to(_block_diag(params["wc1"], params["wc2"], params["wz"]),
                  a_in, h_pad).astype(wdt)

    # ---- pre stages: block_diag(p1w, p2w, I) carries inZ through intact.
    if pre_stages > 0:
        eye = jnp.eye(two_in, dtype=f32)
        pw = jnp.stack([
            _pad_to(_block_diag(params["p1w"][i], params["p2w"][i], eye),
                    h_pad, h_pad)
            for i in range(pre_stages)]).astype(wdt)

    # ---- cat stage: one stacked weight on the packed tile; the subtraction
    #      diff = inC1 - inC2 is folded via [Wd; -Wd]; target folds in too
    #      when preStages == 0 (then target == inC2).
    wcat = params["wcat"]
    w_d = wcat[:in_width]
    w_zrows = wcat[in_width:3 * in_width]
    rows_c2 = -w_d
    if with_target:
        w_t = wcat[3 * in_width:]
        if pre_stages == 0:
            rows_c2 = rows_c2 + w_t
    w_cat = _pad_to(jnp.concatenate([w_d, rows_c2, w_zrows], axis=0),
                    h_pad, cat_pad).astype(wdt)
    if need_target_dot:
        w_tgt = _pad_to(
            jnp.concatenate([jnp.zeros((in_width, two_in), f32), w_t,
                             jnp.zeros((two_in, two_in), f32)], axis=0),
            h_pad, cat_pad).astype(wdt)

    # ---- reduce weight, zero-padded to full 128-lane output.
    w_red = _pad_to(params["wred"], cat_pad, out_pad).astype(wdt)

    # ---- all biases in one small f32 buffer (rows: A, cat, red, pre_i...).
    def brow(b):
        return jnp.pad(b, ((0, 0), (0, lanes - b.shape[1])))

    bias_rows = [
        brow(jnp.concatenate([params["bc1"], params["bc2"], params["bz"]], 1)),
        brow(params["bcat"]),
        brow(params["bred"]),
    ]
    for i in range(pre_stages):
        bias_rows.append(brow(jnp.concatenate(
            [params["p1b"][i], params["p2b"][i],
             jnp.zeros((1, two_in), f32)], axis=1)))
    biases = jnp.concatenate(bias_rows, axis=0).astype(f32)

    # ---- batch tiling: large tiles (HBM / per-step-overhead bound), but
    #      always >= 2 balanced grid steps when possible so the "parallel"
    #      axis shards across both v7x TensorCores.
    align = 16                                   # bf16 output sublane pack
    tile_b = max(align, (tile_b // align) * align)
    pb_min = _round_up(batch, align)
    if tile_b >= pb_min and pb_min > align:
        tile_b = _round_up(pl.cdiv(pb_min, 2), align)
    tile_b = min(tile_b, pb_min)
    pb = _round_up(batch, tile_b)
    grid = (pb // tile_b,)
    # NOTE: for tile_b >= 4096 on v5e, pass vmem_limit_bytes explicitly.

    a = jnp.concatenate([c1, c2, z], axis=1)     # (batch, a_in)
    if pb != batch:
        a = jnp.pad(a, ((0, pb - batch), (0, 0)))

    def resident(arr):                           # fetched once, VMEM-resident
        nd = arr.ndim
        return pl.BlockSpec(arr.shape, lambda i, nd=nd: (0,) * nd)

    args = [a, w_a]
    in_specs = [pl.BlockSpec((tile_b, a_in), lambda i: (i, 0)), resident(w_a)]
    if pre_stages > 0:
        args.append(pw)
        in_specs.append(resident(pw))
    args.append(w_cat)
    in_specs.append(resident(w_cat))
    if need_target_dot:
        args.append(w_tgt)
        in_specs.append(resident(w_tgt))
    args += [w_red, biases]
    in_specs += [resident(w_red), resident(biases)]

    # ---- advisory cost estimate for the XLA scheduler.
    mm_cols = (a_in * h_pad + pre_stages * h_pad * h_pad
               + (2 if need_target_dot else 1) * h_pad * cat_pad
               + cat_pad * out_pad)
    cost = pl.CostEstimate(
        flops=2 * pb * mm_cols,
        transcendentals=pb * out_pad,
        bytes_accessed=sum(int(x.size) * x.dtype.itemsize for x in args)
        + pb * out_pad * 2)

    kernel = functools.partial(_sentnet_kernel, pre_stages, need_target_dot,
                               h_pad, cat_pad, out_pad)
    out = pl.pallas_call(
        kernel,
        grid=grid,
        in_specs=in_specs,
        out_specs=pl.BlockSpec((tile_b, out_pad), lambda i: (i, 0)),
        out_shape=jax.ShapeDtypeStruct((pb, out_pad), jnp.bfloat16),
        compiler_params=pltpu.CompilerParams(
            dimension_semantics=("parallel",),
            vmem_limit_bytes=vmem_limit_bytes),
        cost_estimate=cost,
    )(*args)
    return out[:batch, :width].astype(out_dtype)


def init_params(key, c_width, width, in_width, pre_stages, with_target):
    """PyTorch-Linear-style init; weights stored pre-transposed (in, out)."""
    def lin(k, fan_in, fan_out):
        kw, kb = jax.random.split(k)
        lim = 1.0 / float(fan_in) ** 0.5
        w = jax.random.uniform(kw, (fan_in, fan_out), jnp.float32, -lim, lim)
        b = jax.random.uniform(kb, (1, fan_out), jnp.float32, -lim, lim)
        return w, b

    keys = jax.random.split(key, 5 + 2 * max(pre_stages, 1))
    wc1, bc1 = lin(keys[0], c_width, in_width)
    wc2, bc2 = lin(keys[1], c_width, in_width)
    wz, bz = lin(keys[2], width, in_width * 2)
    cat_width = in_width * (4 if with_target else 3)
    wcat, bcat = lin(keys[3], cat_width, in_width * 2)
    wred, bred = lin(keys[4], in_width * 2, width)

    params = dict(wc1=wc1, bc1=bc1, wc2=wc2, bc2=bc2, wz=wz, bz=bz,
                  wcat=wcat, bcat=bcat, wred=wred, bred=bred)
    if pre_stages > 0:
        p1w, p1b, p2w, p2b = [], [], [], []
        for i in range(pre_stages):
            w1, b1 = lin(keys[5 + 2 * i], in_width, in_width)
            w2, b2 = lin(keys[6 + 2 * i], in_width, in_width)
            p1w.append(w1); p1b.append(b1); p2w.append(w2); p2b.append(b2)
        params.update(p1w=jnp.stack(p1w), p1b=jnp.stack(p1b),
                      p2w=jnp.stack(p2w), p2b=jnp.stack(p2b))
    return params


def sentnet_ref(params, z, c1, c2, *, pre_stages, with_target):
    """Pure-JAX f32 reference mirroring the PyTorch forward exactly."""
    relu = jax.nn.relu
    in_z = relu(z @ params["wz"] + params["bz"])
    in_c1 = relu(c1 @ params["wc1"] + params["bc1"])
    in_c2 = relu(c2 @ params["wc2"] + params["bc2"])
    target = in_c2
    for i in range(pre_stages):
        in_c1 = relu(in_c1 @ params["p1w"][i] + params["p1b"][i])
        in_c2 = relu(in_c2 @ params["p2w"][i] + params["p2b"][i])
    diff = in_c1 - in_c2
    parts = (diff, in_z, target) if with_target else (diff, in_z)
    c = jnp.concatenate(parts, axis=1)
    x = relu(c @ params["wcat"] + params["bcat"])
    return jnp.tanh(x @ params["wred"] + params["bred"])


if __name__ == "__main__":
    def check(c_width, width, in_width, pre_stages, with_target, batch):
        root = jax.random.PRNGKey(0)
        k_p, k_z, k_c1, k_c2 = jax.random.split(root, 4)
        params = init_params(k_p, c_width, width, in_width,
                             pre_stages, with_target)
        z = jax.random.normal(k_z, (batch, width), jnp.float32)
        c1 = jax.random.normal(k_c1, (batch, c_width), jnp.float32)
        c2 = jax.random.normal(k_c2, (batch, c_width), jnp.float32)

        out = sentnet_forward(params, z, c1, c2, pre_stages=pre_stages,
                              with_target=with_target)
        out = jax.block_until_ready(out)
        ref = sentnet_ref(params, z, c1, c2, pre_stages=pre_stages,
                          with_target=with_target)
        assert out.shape == (batch, width)
        # bf16 matmul operands + bf16 output store vs pure-f32 reference.
        err = float(jnp.max(jnp.abs(out - ref)))
        assert jnp.allclose(out, ref, atol=3e-2, rtol=3e-2), \
            f"mismatch vs reference (max abs diff {err:.4g})"

    # SentNet(cWidth=16, width=32, inWidth=32, preStages=2, withTarget=True).
    # batch=200 with default tile selection -> 2-step "parallel" grid plus
    # the batch pad / slice-back path.
    check(16, 32, 32, 2, True, 200)
    # preStages=0 path (target folded into the single cat weight), odd batch.
    check(16, 32, 32, 0, True, 37)

    print("KERNEL_OK")
</pallas_src>

<mosaic_0001>
module attributes {stable_mosaic.version = 11 : i64} {
  func.func @_sentnet_kernel(%arg0: i32, %arg1: memref<112x64xf32, #tpu.memory_space<vmem>>, %arg2: memref<64x128xbf16, #tpu.memory_space<vmem>>, %arg3: memref<2x128x128xbf16, #tpu.memory_space<vmem>>, %arg4: memref<128x128xbf16, #tpu.memory_space<vmem>>, %arg5: memref<128x128xbf16, #tpu.memory_space<vmem>>, %arg6: memref<128x128xbf16, #tpu.memory_space<vmem>>, %arg7: memref<5x128xf32, #tpu.memory_space<vmem>>, %arg8: memref<112x128xbf16, #tpu.memory_space<vmem>>) attributes {dimension_semantics = [#tpu.dimension_semantics<parallel>], iteration_bounds = array<i64: 2>, scalar_prefetch = 0 : i64, scratch_operands = 0 : i64, tpu.core_type = #tpu.core_type<tc>, window_params = [{transform_indices = @transform_0, window_bounds = array<i64: 112, 64>}, {pipeline_mode = #tpu.pipeline_mode<synchronous>, transform_indices = @transform_1, window_bounds = array<i64: 64, 128>}, {pipeline_mode = #tpu.pipeline_mode<synchronous>, transform_indices = @transform_2, window_bounds = array<i64: 2, 128, 128>}, {pipeline_mode = #tpu.pipeline_mode<synchronous>, transform_indices = @transform_3, window_bounds = array<i64: 128, 128>}, {pipeline_mode = #tpu.pipeline_mode<synchronous>, transform_indices = @transform_4, window_bounds = array<i64: 128, 128>}, {pipeline_mode = #tpu.pipeline_mode<synchronous>, transform_indices = @transform_5, window_bounds = array<i64: 128, 128>}, {pipeline_mode = #tpu.pipeline_mode<synchronous>, transform_indices = @transform_6, window_bounds = array<i64: 5, 128>}, {transform_indices = @transform_7, window_bounds = array<i64: 112, 128>}]} {
    %c0 = arith.constant 0 : index
    %c0_0 = arith.constant 0 : index
    %0 = vector.load %arg7[%c0, %c0_0] : memref<5x128xf32, #tpu.memory_space<vmem>>, vector<5x128xf32>
    %c0_1 = arith.constant 0 : index
    %c0_2 = arith.constant 0 : index
    %1 = vector.load %arg1[%c0_1, %c0_2] : memref<112x64xf32, #tpu.memory_space<vmem>>, vector<112x64xf32>
    %c0_3 = arith.constant 0 : index
    %c0_4 = arith.constant 0 : index
    %2 = vector.load %arg2[%c0_3, %c0_4] : memref<64x128xbf16, #tpu.memory_space<vmem>>, vector<64x128xbf16>
    %3 = arith.truncf %1 : vector<112x64xf32> to vector<112x64xbf16>
    %cst = arith.constant dense<0.000000e+00> : vector<112x128xf32>
    %4 = tpu.matmul %3, %2, %cst {dimension_numbers = #tpu.dot_dimension_numbers<[1], [0], [0], [1], [0, 0, 1, 1], [], []>} : vector<112x64xbf16>, vector<64x128xbf16>, vector<112x128xf32> -> vector<112x128xf32>
    %5 = vector.extract_strided_slice %0 {offsets = [0, 0], sizes = [1, 128], strides = [1, 1]} : vector<5x128xf32> to vector<1x128xf32>
    %6 = vector.broadcast %5 : vector<1x128xf32> to vector<112x128xf32>
    %7 = arith.addf %4, %6 : vector<112x128xf32>
    %cst_5 = arith.constant 0.000000e+00 : f32
    %8 = vector.broadcast %cst_5 : f32 to vector<112x128xf32>
    %9 = arith.maximumf %7, %8 : vector<112x128xf32>
    %c0_6 = arith.constant 0 : index
    %c0_7 = arith.constant 0 : index
    %c0_8 = arith.constant 0 : index
    %10 = vector.load %arg3[%c0_6, %c0_7, %c0_8] : memref<2x128x128xbf16, #tpu.memory_space<vmem>>, vector<1x128x128xbf16>
    %11 = vector.shape_cast %10 : vector<1x128x128xbf16> to vector<128x128xbf16>
    %12 = arith.truncf %9 : vector<112x128xf32> to vector<112x128xbf16>
    %cst_9 = arith.constant dense<0.000000e+00> : vector<112x128xf32>
    %13 = tpu.matmul %12, %11, %cst_9 {dimension_numbers = #tpu.dot_dimension_numbers<[1], [0], [0], [1], [0, 0, 1, 1], [], []>} : vector<112x128xbf16>, vector<128x128xbf16>, vector<112x128xf32> -> vector<112x128xf32>
    %14 = vector.extract_strided_slice %0 {offsets = [3, 0], sizes = [1, 128], strides = [1, 1]} : vector<5x128xf32> to vector<1x128xf32>
    %15 = vector.broadcast %14 : vector<1x128xf32> to vector<112x128xf32>
    %16 = arith.addf %13, %15 : vector<112x128xf32>
    %cst_10 = arith.constant 0.000000e+00 : f32
    %17 = vector.broadcast %cst_10 : f32 to vector<112x128xf32>
    %18 = arith.maximumf %16, %17 : vector<112x128xf32>
    %c1 = arith.constant 1 : index
    %c0_11 = arith.constant 0 : index
    %c0_12 = arith.constant 0 : index
    %19 = vector.load %arg3[%c1, %c0_11, %c0_12] : memref<2x128x128xbf16, #tpu.memory_space<vmem>>, vector<1x128x128xbf16>
    %20 = vector.shape_cast %19 : vector<1x128x128xbf16> to vector<128x128xbf16>
    %21 = arith.truncf %18 : vector<112x128xf32> to vector<112x128xbf16>
    %cst_13 = arith.constant dense<0.000000e+00> : vector<112x128xf32>
    %22 = tpu.matmul %21, %20, %cst_13 {dimension_numbers = #tpu.dot_dimension_numbers<[1], [0], [0], [1], [0, 0, 1, 1], [], []>} : vector<112x128xbf16>, vector<128x128xbf16>, vector<112x128xf32> -> vector<112x128xf32>
    %23 = vector.extract_strided_slice %0 {offsets = [4, 0], sizes = [1, 128], strides = [1, 1]} : vector<5x128xf32> to vector<1x128xf32>
    %24 = vector.broadcast %23 : vector<1x128xf32> to vector<112x128xf32>
    %25 = arith.addf %22, %24 : vector<112x128xf32>
    %cst_14 = arith.constant 0.000000e+00 : f32
    %26 = vector.broadcast %cst_14 : f32 to vector<112x128xf32>
    %27 = arith.maximumf %25, %26 : vector<112x128xf32>
    %c0_15 = arith.constant 0 : index
    %c0_16 = arith.constant 0 : index
    %28 = vector.load %arg4[%c0_15, %c0_16] : memref<128x128xbf16, #tpu.memory_space<vmem>>, vector<128x128xbf16>
    %29 = arith.truncf %27 : vector<112x128xf32> to vector<112x128xbf16>
    %cst_17 = arith.constant dense<0.000000e+00> : vector<112x128xf32>
    %30 = tpu.matmul %29, %28, %cst_17 {dimension_numbers = #tpu.dot_dimension_numbers<[1], [0], [0], [1], [0, 0, 1, 1], [], []>} : vector<112x128xbf16>, vector<128x128xbf16>, vector<112x128xf32> -> vector<112x128xf32>
    %31 = vector.extract_strided_slice %0 {offsets = [1, 0], sizes = [1, 128], strides = [1, 1]} : vector<5x128xf32> to vector<1x128xf32>
    %32 = vector.broadcast %31 : vector<1x128xf32> to vector<112x128xf32>
    %33 = arith.addf %30, %32 : vector<112x128xf32>
    %c0_18 = arith.constant 0 : index
    %c0_19 = arith.constant 0 : index
    %34 = vector.load %arg5[%c0_18, %c0_19] : memref<128x128xbf16, #tpu.memory_space<vmem>>, vector<128x128xbf16>
    %35 = arith.truncf %9 : vector<112x128xf32> to vector<112x128xbf16>
    %cst_20 = arith.constant dense<0.000000e+00> : vector<112x128xf32>
    %36 = tpu.matmul %35, %34, %cst_20 {dimension_numbers = #tpu.dot_dimension_numbers<[1], [0], [0], [1], [0, 0, 1, 1], [], []>} : vector<112x128xbf16>, vector<128x128xbf16>, vector<112x128xf32> -> vector<112x128xf32>
    %37 = arith.addf %33, %36 : vector<112x128xf32>
    %cst_21 = arith.constant 0.000000e+00 : f32
    %38 = vector.broadcast %cst_21 : f32 to vector<112x128xf32>
    %39 = arith.maximumf %37, %38 : vector<112x128xf32>
    %c0_22 = arith.constant 0 : index
    %c0_23 = arith.constant 0 : index
    %40 = vector.load %arg6[%c0_22, %c0_23] : memref<128x128xbf16, #tpu.memory_space<vmem>>, vector<128x128xbf16>
    %41 = arith.truncf %39 : vector<112x128xf32> to vector<112x128xbf16>
    %cst_24 = arith.constant dense<0.000000e+00> : vector<112x128xf32>
    %42 = tpu.matmul %41, %40, %cst_24 {dimension_numbers = #tpu.dot_dimension_numbers<[1], [0], [0], [1], [0, 0, 1, 1], [], []>} : vector<112x128xbf16>, vector<128x128xbf16>, vector<112x128xf32> -> vector<112x128xf32>
    %43 = vector.extract_strided_slice %0 {offsets = [2, 0], sizes = [1, 128], strides = [1, 1]} : vector<5x128xf32> to vector<1x128xf32>
    %44 = vector.broadcast %43 : vector<1x128xf32> to vector<112x128xf32>
    %45 = arith.addf %42, %44 : vector<112x128xf32>
    %46 = math.tanh %45 : vector<112x128xf32>
    %47 = arith.truncf %46 : vector<112x128xf32> to vector<112x128xbf16>
    %c0_25 = arith.constant 0 : index
    %c0_26 = arith.constant 0 : index
    %48 = vector.load %arg8[%c0_25, %c0_26] : memref<112x128xbf16, #tpu.memory_space<vmem>>, vector<112x128xbf16>
    tpu.vector_store %arg8[%c0_25, %c0_26], %47 {strides = array<i32>} : memref<112x128xbf16, #tpu.memory_space<vmem>>, vector<112x128xbf16>,
    return
  }
  func.func @transform_0(%arg0: i32) -> (i32, i32) {
    %c0_i32 = arith.constant 0 : i32
    %c0_i32_0 = arith.constant 0 : i32
    return %arg0, %c0_i32 : i32, i32
  }
  func.func @transform_1(%arg0: i32) -> (i32, i32) {
    %c0_i32 = arith.constant 0 : i32
    %c0_i32_0 = arith.constant 0 : i32
    %c0_i32_1 = arith.constant 0 : i32
    return %c0_i32, %c0_i32_0 : i32, i32
  }
  func.func @transform_2(%arg0: i32) -> (i32, i32, i32) {
    %c0_i32 = arith.constant 0 : i32
    %c0_i32_0 = arith.constant 0 : i32
    %c0_i32_1 = arith.constant 0 : i32
    %c0_i32_2 = arith.constant 0 : i32
    return %c0_i32, %c0_i32_0, %c0_i32_1 : i32, i32, i32
  }
  func.func @transform_3(%arg0: i32) -> (i32, i32) {
    %c0_i32 = arith.constant 0 : i32
    %c0_i32_0 = arith.constant 0 : i32
    %c0_i32_1 = arith.constant 0 : i32
    return %c0_i32, %c0_i32_0 : i32, i32
  }
  func.func @transform_4(%arg0: i32) -> (i32, i32) {
    %c0_i32 = arith.constant 0 : i32
    %c0_i32_0 = arith.constant 0 : i32
    %c0_i32_1 = arith.constant 0 : i32
    return %c0_i32, %c0_i32_0 : i32, i32
  }
  func.func @transform_5(%arg0: i32) -> (i32, i32) {
    %c0_i32 = arith.constant 0 : i32
    %c0_i32_0 = arith.constant 0 : i32
    %c0_i32_1 = arith.constant 0 : i32
    return %c0_i32, %c0_i32_0 : i32, i32
  }
  func.func @transform_6(%arg0: i32) -> (i32, i32) {
    %c0_i32 = arith.constant 0 : i32
    %c0_i32_0 = arith.constant 0 : i32
    %c0_i32_1 = arith.constant 0 : i32
    return %c0_i32, %c0_i32_0 : i32, i32
  }
  func.func @transform_7(%arg0: i32) -> (i32, i32) {
    %c0_i32 = arith.constant 0 : i32
    %c0_i32_0 = arith.constant 0 : i32
    return %arg0, %c0_i32 : i32, i32
  }
}

</mosaic_0001>

<llo_original>
// kernel: tpu_custom_call.1
$region0: #{tpu_custom_call.1}
  #allocation0 [shape = 'u32[]', space=smem, size = 0x4, offset = 0x4, fixed_abs, tag = 'smem constant byte address 0x4 - core index']
  #allocation1 [shape = 'u32[144,128]{1,0:T(1,128)}', space=vmem, size = 0x12000, scoped, tag = 'internal scratch']
  %s0 = inlined_call_operand.vmem [shape: f32[224,64], index: 0, kind: input, shape index: {}]
  %s1 = inlined_call_operand.vmem [shape: bf16[64,128], index: 1, kind: input, shape index: {}]
  %s2 = inlined_call_operand.vmem [shape: bf16[2,128,128], index: 2, kind: input, shape index: {}]
  %s3 = inlined_call_operand.vmem [shape: bf16[128,128], index: 3, kind: input, shape index: {}]
  %s4 = inlined_call_operand.vmem [shape: bf16[128,128], index: 4, kind: input, shape index: {}]
  %s5 = inlined_call_operand.vmem [shape: bf16[128,128], index: 5, kind: input, shape index: {}]
  %s6 = inlined_call_operand.vmem [shape: f32[5,128], index: 6, kind: input, shape index: {}]
  %s7 = inlined_call_operand.hbm [shape: bf16[224,128], index: 7, kind: output, shape index: {}]
  %s8 = sld [smem:[#allocation0]]
  $region61: #{tpu_custom_call.1} parent=0
    _
  %s10 = ssub.s32 1, %s8
  %s11 = scalar_select 0, %s10, %s8
  $region1: #{tpu_custom_call.1} parent=0
    #allocation2 [shape = 'u8[57344]{0}', space=vmem, size = 0xe000, scoped, tag = 'output window, operand 0']
    #allocation3 [shape = 's32[2]{0}', space=sflag, size = 0x8, scoped, tag = 'scoped memory for tpu_custom_call.1']
    %12 = vsyncpa [#allocation3], 0
    %s13 = scalar_lea.sflag [#allocation3], 1
    %14 = vsyncpa %s13, 0
    loop: start=0, step=1, limit=4
    $region2: #{tpu_custom_call.1} parent=1 // loop_pre_header
      _
    $region3: #{tpu_custom_call.1} parent=1 // loop_header
      %s16 = sphi 0, %s20
      %p17 = scmp.ge.s32.totalorder %s16, 4
      %s26 = sphi 0, %s28
      %s29 = sphi 0, %s26
      %s30 = sphi 0, %s29
      %s46 = sphi 0, %s30
      %s50 = sphi 0, %s50
      %s52 = sphi 0, %s50
      %s53 = sphi 0, %s52
      %s67 = sphi 0, %s53
      %s71 = sphi 0, %s71
      %s73 = sphi 0, %s71
      %s74 = sphi 0, %s73
      %s88 = sphi 0, %s74
      %s92 = sphi 0, %s92
      %s94 = sphi 0, %s92
      %s95 = sphi 0, %s94
      %s109 = sphi 0, %s95
      %s113 = sphi 0, %s113
      %s115 = sphi 0, %s113
      %s116 = sphi 0, %s115
      %s130 = sphi 0, %s116
      %s134 = sphi 0, %s134
      %s136 = sphi 0, %s134
      %s137 = sphi 0, %s136
      %s151 = sphi 0, %s137
      %s155 = sphi 0, %s155
      %s157 = sphi 0, %s155
      %s158 = sphi 0, %s157
      %s172 = sphi 0, %s158
      %s178 = sphi 0, %s180
      %s181 = sphi 0, %s178
      %s182 = sphi 0, %s181
      %s198 = sphi 0, %s182
    $region4: #{tpu_custom_call.1} parent=1 // loop_header_branch
      %19 = sbr.rel (%p17) target = $region8
    $region5: #{tpu_custom_call.1} parent=1 // loop_body
      %s21 = ssub.s32 %s16, 1
      %s22 = ssub.s32 %s16, 2
      %s23 = sadd.s32 %s16, 1
      %s24 = ssub.s32 %s16, %s23
      %p25 = scmp.eq.s32.totalorder %s24, 0
      %s27 = sadd.s32 %s26, 1
      %s28 = scalar_select %p25, %s26, %s27
      %p31 = pneg %p25
      %p32 = scmp.eq.s32.totalorder %s16, 1
      %p33 = por %p31, %p32
      %p34 = scmp.ne.s32.totalorder %s26, %s29
      %p35 = scmp.eq.s32.totalorder %s16, 0
      %p36 = por %p34, %p35
      %p37 = scmp.ne.s32.totalorder %s26, %s29
      %p38 = scmp.eq.s32.totalorder %s21, 1
      %p39 = por %p37, %p38
      %p40 = scmp.ne.s32.totalorder %s29, %s30
      %p41 = scmp.eq.s32.totalorder %s21, 0
      %p42 = por %p40, %p41
      %p43 = scmp.ne.s32.totalorder %s29, %s30
      %p44 = scmp.eq.s32.totalorder %s22, 1
      %p45 = por %p43, %p44
      %p47 = scmp.ne.s32.totalorder %s30, %s46
      %p48 = scmp.eq.s32.totalorder %s22, 0
      %p49 = por %p47, %p48
      %s51 = sadd.s32 %s50, 1
      %p54 = scmp.eq.s32.totalorder %s16, 1
      %p55 = scmp.ne.s32.totalorder %s50, %s52
      %p56 = scmp.eq.s32.totalorder %s16, 0
      %p57 = por %p55, %p56
      %p58 = scmp.ne.s32.totalorder %s50, %s52
      %p59 = scmp.eq.s32.totalorder %s21, 1
      %p60 = por %p58, %p59
      %p61 = scmp.ne.s32.totalorder %s52, %s53
      %p62 = scmp.eq.s32.totalorder %s21, 0
      %p63 = por %p61, %p62
      %p64 = scmp.ne.s32.totalorder %s52, %s53
      %p65 = scmp.eq.s32.totalorder %s22, 1
      %p66 = por %p64, %p65
      %p68 = scmp.ne.s32.totalorder %s53, %s67
      %p69 = scmp.eq.s32.totalorder %s22, 0
      %p70 = por %p68, %p69
      %s72 = sadd.s32 %s71, 1
      %p75 = scmp.eq.s32.totalorder %s16, 1
      %p76 = scmp.ne.s32.totalorder %s71, %s73
      %p77 = scmp.eq.s32.totalorder %s16, 0
      %p78 = por %p76, %p77
      %p79 = scmp.ne.s32.totalorder %s71, %s73
      %p80 = scmp.eq.s32.totalorder %s21, 1
      %p81 = por %p79, %p80
      %p82 = scmp.ne.s32.totalorder %s73, %s74
      %p83 = scmp.eq.s32.totalorder %s21, 0
      %p84 = por %p82, %p83
      %p85 = scmp.ne.s32.totalorder %s73, %s74
      %p86 = scmp.eq.s32.totalorder %s22, 1
      %p87 = por %p85, %p86
      %p89 = scmp.ne.s32.totalorder %s74, %s88
      %p90 = scmp.eq.s32.totalorder %s22, 0
      %p91 = por %p89, %p90
      %s93 = sadd.s32 %s92, 1
      %p96 = scmp.eq.s32.totalorder %s16, 1
      %p97 = scmp.ne.s32.totalorder %s92, %s94
      %p98 = scmp.eq.s32.totalorder %s16, 0
      %p99 = por %p97, %p98
      %p100 = scmp.ne.s32.totalorder %s92, %s94
      %p101 = scmp.eq.s32.totalorder %s21, 1
      %p102 = por %p100, %p101
      %p103 = scmp.ne.s32.totalorder %s94, %s95
      %p104 = scmp.eq.s32.totalorder %s21, 0
      %p105 = por %p103, %p104
      %p106 = scmp.ne.s32.totalorder %s94, %s95
      %p107 = scmp.eq.s32.totalorder %s22, 1
      %p108 = por %p106, %p107
      %p110 = scmp.ne.s32.totalorder %s95, %s109
      %p111 = scmp.eq.s32.totalorder %s22, 0
      %p112 = por %p110, %p111
      %s114 = sadd.s32 %s113, 1
      %p117 = scmp.eq.s32.totalorder %s16, 1
      %p118 = scmp.ne.s32.totalorder %s113, %s115
      %p119 = scmp.eq.s32.totalorder %s16, 0
      %p120 = por %p118, %p119
      %p121 = scmp.ne.s32.totalorder %s113, %s115
      %p122 = scmp.eq.s32.totalorder %s21, 1
      %p123 = por %p121, %p122
      %p124 = scmp.ne.s32.totalorder %s115, %s116
      %p125 = scmp.eq.s32.totalorder %s21, 0
      %p126 = por %p124, %p125
      %p127 = scmp.ne.s32.totalorder %s115, %s116
      %p128 = scmp.eq.s32.totalorder %s22, 1
      %p129 = por %p127, %p128
      %p131 = scmp.ne.s32.totalorder %s116, %s130
      %p132 = scmp.eq.s32.totalorder %s22, 0
      %p133 = por %p131, %p132
      %s135 = sadd.s32 %s134, 1
      %p138 = scmp.eq.s32.totalorder %s16, 1
      %p139 = scmp.ne.s32.totalorder %s134, %s136
      %p140 = scmp.eq.s32.totalorder %s16, 0
      %p141 = por %p139, %p140
      %p142 = scmp.ne.s32.totalorder %s134, %s136
      %p143 = scmp.eq.s32.totalorder %s21, 1
      %p144 = por %p142, %p143
      %p145 = scmp.ne.s32.totalorder %s136, %s137
      %p146 = scmp.eq.s32.totalorder %s21, 0
      %p147 = por %p145, %p146
      %p148 = scmp.ne.s32.totalorder %s136, %s137
      %p149 = scmp.eq.s32.totalorder %s22, 1
      %p150 = por %p148, %p149
      %p152 = scmp.ne.s32.totalorder %s137, %s151
      %p153 = scmp.eq.s32.totalorder %s22, 0
      %p154 = por %p152, %p153
      %s156 = sadd.s32 %s155, 1
      %p159 = scmp.eq.s32.totalorder %s16, 1
      %p160 = scmp.ne.s32.totalorder %s155, %s157
      %p161 = scmp.eq.s32.totalorder %s16, 0
      %p162 = por %p160, %p161
      %p163 = scmp.ne.s32.totalorder %s155, %s157
      %p164 = scmp.eq.s32.totalorder %s21, 1
      %p165 = por %p163, %p164
      %p166 = scmp.ne.s32.totalorder %s157, %s158
      %p167 = scmp.eq.s32.totalorder %s21, 0
      %p168 = por %p166, %p167
      %p169 = scmp.ne.s32.totalorder %s157, %s158
      %p170 = scmp.eq.s32.totalorder %s22, 1
      %p171 = por %p169, %p170
      %p173 = scmp.ne.s32.totalorder %s158, %s172
      %p174 = scmp.eq.s32.totalorder %s22, 0
      %p175 = por %p173, %p174
      %s176 = ssub.s32 %s16, %s23
      %p177 = scmp.eq.s32.totalorder %s176, 0
      %s179 = sadd.s32 %s178, 1
      %s180 = scalar_select %p177, %s178, %s179
      %p183 = pneg %p177
      %p184 = scmp.eq.s32.totalorder %s16, 1
      %p185 = por %p183, %p184
      %p186 = scmp.ne.s32.totalorder %s178, %s181
      %p187 = scmp.eq.s32.totalorder %s16, 0
      %p188 = por %p186, %p187
      %p189 = scmp.ne.s32.totalorder %s178, %s181
      %p190 = scmp.eq.s32.totalorder %s21, 1
      %p191 = por %p189, %p190
      %p192 = scmp.ne.s32.totalorder %s181, %s182
      %p193 = scmp.eq.s32.totalorder %s21, 0
      %p194 = por %p192, %p193
      %p195 = scmp.ne.s32.totalorder %s181, %s182
      %p196 = scmp.eq.s32.totalorder %s22, 1
      %p197 = por %p195, %p196
      %p199 = scmp.ne.s32.totalorder %s182, %s198
      %p200 = scmp.eq.s32.totalorder %s22, 0
      %p201 = por %p199, %p200
      %p202 = scmp.le.s32.totalorder 1, %s16
      %p203 = scmp.lt.s32.totalorder %s16, 3
      %p204 = pnand %p202, %p203
      %p205 = pneg %p204
      // Predicated region
      $region9: #{tpu_custom_call.1} parent=5 // pred_check
        _
      $region10: #{tpu_custom_call.1} parent=5 // pred_check_branch
        %207 = sbr.rel (%p204) target = $region12
      $region11: #{tpu_custom_call.1} parent=5 // pred_region
        %s208 = ssub.s32 %s16, 1
        // Predicated region
        $region13: #{tpu_custom_call.1} parent=11 // pred_check
          %p209 = pneg %p63
        $region14: #{tpu_custom_call.1} parent=11 // pred_check_branch
          %211 = sbr.rel (%p209) target = $region16
        $region15: #{tpu_custom_call.1} parent=11 // pred_region
          _
        $region16: #{tpu_custom_call.1} parent=11 // pred_fallthru
          _
        // Predicated region
        $region17: #{tpu_custom_call.1} parent=11 // pred_check
          %p212 = pneg %p84
        $region18: #{tpu_custom_call.1} parent=11 // pred_check_branch
          %214 = sbr.rel (%p212) target = $region20
        $region19: #{tpu_custom_call.1} parent=11 // pred_region
          _
        $region20: #{tpu_custom_call.1} parent=11 // pred_fallthru
          _
        // Predicated region
        $region21: #{tpu_custom_call.1} parent=11 // pred_check
          %p215 = pneg %p105
        $region22: #{tpu_custom_call.1} parent=11 // pred_check_branch
          %217 = sbr.rel (%p215) target = $region24
        $region23: #{tpu_custom_call.1} parent=11 // pred_region
          _
        $region24: #{tpu_custom_call.1} parent=11 // pred_fallthru
          _
        // Predicated region
        $region25: #{tpu_custom_call.1} parent=11 // pred_check
          %p218 = pneg %p126
        $region26: #{tpu_custom_call.1} parent=11 // pred_check_branch
          %220 = sbr.rel (%p218) target = $region28
        $region27: #{tpu_custom_call.1} parent=11 // pred_region
          _
        $region28: #{tpu_custom_call.1} parent=11 // pred_fallthru
          _
        // Predicated region
        $region29: #{tpu_custom_call.1} parent=11 // pred_check
          %p221 = pneg %p147
        $region30: #{tpu_custom_call.1} parent=11 // pred_check_branch
          %223 = sbr.rel (%p221) target = $region32
        $region31: #{tpu_custom_call.1} parent=11 // pred_region
          _
        $region32: #{tpu_custom_call.1} parent=11 // pred_fallthru
          _
        // Predicated region
        $region33: #{tpu_custom_call.1} parent=11 // pred_check
          %p224 = pneg %p168
        $region34: #{tpu_custom_call.1} parent=11 // pred_check_branch
          %226 = sbr.rel (%p224) target = $region36
        $region35: #{tpu_custom_call.1} parent=11 // pred_region
          _
        $region36: #{tpu_custom_call.1} parent=11 // pred_fallthru
          _
      $region12: #{tpu_custom_call.1} parent=5 // pred_fallthru
        _
      %p227 = scmp.lt.s32.totalorder %s16, 2
      // Predicated region
      $region37: #{tpu_custom_call.1} parent=5 // pred_check
        %p228 = pneg %p227
      $region38: #{tpu_custom_call.1} parent=5 // pred_check_branch
        %230 = sbr.rel (%p228) target = $region40
      $region39: #{tpu_custom_call.1} parent=5 // pred_region
        // Predicated region
        $region41: #{tpu_custom_call.1} parent=39 // pred_check
          %p231 = pneg %p36
        $region42: #{tpu_custom_call.1} parent=39 // pred_check_branch
          %233 = sbr.rel (%p231) target = $region44
        $region43: #{tpu_custom_call.1} parent=39 // pred_region
          %s234 = smul.u32 14, %s16
          %p235 = scmp.lt.s32.totalorder %s234, 27
          %s236 = scalar_select %p235, %s234, 27
          %s237 = smul.addr %s236, 8
          %s238 = scalar_lea.vmem %s0, %s237
          %s239 = smul.u32 14, %s16
        $region44: #{tpu_custom_call.1} parent=39 // pred_fallthru
          _
      $region40: #{tpu_custom_call.1} parent=5 // pred_fallthru
        _
      %p240 = scmp.le.s32.totalorder 1, %s16
      %p241 = scmp.lt.s32.totalorder %s16, 3
      %p242 = pnand %p240, %p241
      %p243 = pneg %p242
      // Predicated region
      $region45: #{tpu_custom_call.1} parent=5 // pred_check
        _
      $region46: #{tpu_custom_call.1} parent=5 // pred_check_branch
        %245 = sbr.rel (%p242) target = $region48
      $region47: #{tpu_custom_call.1} parent=5 // pred_region
        %s246 = ssub.s32 %s16, 1
        %s247 = smul.u32 14, %s21
        %p248 = scmp.lt.s32.totalorder %s247, 27
        %s249 = scalar_select %p248, %s247, 27
        %s250 = smul.addr %s249, 8
        %s251 = scalar_lea.vmem %s0, %s250
        %p252 = pneg %p42
        %p253 = pneg %p39
        %p254 = pneg %p63
        %p255 = pneg %p60
        %p256 = pneg %p84
        %p257 = pneg %p81
        %p258 = pneg %p105
        %p259 = pneg %p102
        %p260 = pneg %p126
        %p261 = pneg %p123
        %p262 = pneg %p147
        %p263 = pneg %p144
        %p264 = pneg %p168
        %p265 = pneg %p165
        %p266 = pneg %p194
        %p267 = pneg %p191
        %s268 = sand.u32 %s181, 1
        %s269 = scalar_lea.sflag [#allocation3], %s268
        %s270 = sand.u32 %s181, 1
        %s271 = smul.addr %s270, 56
        %s272 = scalar_lea.vmem [#allocation2], %s271
        %s273 = smul.u32 14, %s21
        %p274 = scmp.lt.s32.totalorder %s273, 27
        %s275 = scalar_select %p274, %s273, 27
        %s276 = smul.addr %s275, 8
        %s277 = scalar_lea.vmem %s0, %s276
        %s278 = smul.u32 14, %s21
        %s279 = smul.u32 14, %s21
        %v281 = vld [vmem:[%s6] sm:$0x1f]
        %v282 = vld [vmem:[%s277] sm:$0xff]
        %v283 = vld [vmem:[%s277 + $0x8] sm:$0xff]
        %v284 = vld [vmem:[%s277 + $0x10] sm:$0xff]
        %v285 = vld [vmem:[%s277 + $0x18] sm:$0xff]
        %v286 = vld [vmem:[%s277 + $0x20] sm:$0xff]
        %v287 = vld [vmem:[%s277 + $0x28] sm:$0xff]
        %v288 = vld [vmem:[%s277 + $0x30] sm:$0xff]
        %v289 = vld [vmem:[%s277 + $0x38] sm:$0xff]
        %v290 = vld [vmem:[%s277 + $0x40] sm:$0xff]
        %v291 = vld [vmem:[%s277 + $0x48] sm:$0xff]
        %v292 = vld [vmem:[%s277 + $0x50] sm:$0xff]
        %v293 = vld [vmem:[%s277 + $0x58] sm:$0xff]
        %v294 = vld [vmem:[%s277 + $0x60] sm:$0xff]
        %v295 = vld [vmem:[%s277 + $0x68] sm:$0xff]
        %v296 = vld [vmem:[%s1] sm:$0xf]
        %v297 = vld [vmem:[%s1 + $0x4] sm:$0xf]
        %v298 = vld [vmem:[%s1 + $0x8] sm:$0xf]
        %v299 = vld [vmem:[%s1 + $0xc] sm:$0xf]
        %v300 = vld [vmem:[%s1 + $0x10] sm:$0xf]
        %v301 = vld [vmem:[%s1 + $0x14] sm:$0xf]
        %v302 = vld [vmem:[%s1 + $0x18] sm:$0xf]
        %v303 = vld [vmem:[%s1 + $0x1c] sm:$0xf]
        %v304 = vpack.c.bf16 %v283, %v282
        %v305 = vpack.c.bf16 %v285, %v284
        %v306 = vpack.c.bf16 %v287, %v286
        %v307 = vpack.c.bf16 %v289, %v288
        %v308 = vpack.c.bf16 %v291, %v290
        %v309 = vpack.c.bf16 %v293, %v292
        %v310 = vpack.c.bf16 %v295, %v294
        %v311 = vlaneseq
        %v312 = vshrl.u32 %v311, 7
        %v313 = vsub.s32 0, %v312
        %v314 = vrot.slane %v281, %v313
        %v323 = vunpack.c.l.b16 %v296
        %v324 = vunpack.c.l.b16 %v297
        %v325 = vunpack.c.l.b16 %v298
        %v326 = vunpack.c.l.b16 %v299
        %v327 = vunpack.c.l.b16 %v300
        %v328 = vunpack.c.l.b16 %v301
        %v329 = vunpack.c.l.b16 %v302
        %v330 = vunpack.c.l.b16 %v303
        %v331 = vpack.c.b16 %v324, %v323
        %v332 = vpack.c.b16 %v326, %v325
        %v333 = vpack.c.b16 %v328, %v327
        %v334 = vpack.c.b16 %v330, %v329
        %vm339 = vcmask 523264
        %v341 = vsel %vm339, %v304, 0
        %v344 = vsel %vm339, %v305, 0
        %v347 = vsel %vm339, %v306, 0
        %v350 = vsel %vm339, %v307, 0
        %v353 = vsel %vm339, %v308, 0
        %v356 = vsel %vm339, %v309, 0
        %v359 = vsel %vm339, %v310, 0
        %361 = vmatprep.subr.bf16.mxu0 0
        %362 = vmatpush1.bf16.msra.mxu0 %v331
        %363 = vmatprep.subr.bf16.mxu0 0
        %364 = vmatpush1.bf16.msra.mxu0 %v332
        %365 = vmatprep.subr.bf16.mxu0 0
        %366 = vmatpush1.bf16.msra.mxu0 %v333
        %367 = vmatprep.subr.bf16.mxu0 0
        %368 = vmatpush1.bf16.msra.mxu0 %v334
        %369 = vmatprep.subr.bf16.mxu0 0
        %370 = vmatpush1.bf16.msra.mxu0 0
        %371 = vmatprep.subr.bf16.mxu0 0
        %372 = vmatpush1.bf16.msra.mxu0 0
        %373 = vmatprep.subr.bf16.mxu0 0
        %374 = vmatpush1.bf16.msra.mxu0 0
        %375 = vmatprep.subr.bf16.mxu0 0
        %376 = vmatpush1.bf16.msra.mxu0 0
        %377 = vmatprep.subr.bf16.mxu0 0
        %378 = vmatpush1.bf16.msra.mxu0 0
        %379 = vmatprep.subr.bf16.mxu0 0
        %380 = vmatpush1.bf16.msra.mxu0 0
        %381 = vmatprep.subr.bf16.mxu0 0
        %382 = vmatpush1.bf16.msra.mxu0 0
        %383 = vmatprep.subr.bf16.mxu0 0
        %384 = vmatpush1.bf16.msra.mxu0 0
        %385 = vmatprep.subr.bf16.mxu0 0
        %386 = vmatpush1.bf16.msra.mxu0 0
        %387 = vmatprep.subr.bf16.mxu0 0
        %388 = vmatpush1.bf16.msra.mxu0 0
        %389 = vmatprep.subr.bf16.mxu0 0
        %390 = vmatpush1.bf16.msra.mxu0 0
        %391 = vmatprep.subr.bf16.mxu0 0
        %392 = vmatpush1.bf16.msra.mxu0 0
        %393 = vmatprep.mubr.bf16.mxu0 0
        %394 = vmatmul.mubr.bf16.gmra.mrb[0].mxu0 %v341
        %v395 = vpop.f32.mrb[0].mxu0
        %v396 = vadd.f32 %v314, %v395
        %v397 = vpop.f32.mrb[0].mxu0
        %v398 = vpop.f32.mrb[0].mxu0
        %v399 = vadd.f32 %v314, %v398
        %v400 = vpop.f32.mrb[0].mxu0
        %401 = vmatprep.mubr.bf16.mxu0 0
        %402 = vmatmul.mubr.bf16.gmra.mrb[0].mxu0 %v344
        %v403 = vpop.f32.mrb[0].mxu0
        %v404 = vadd.f32 %v314, %v403
        %v405 = vpop.f32.mrb[0].mxu0
        %v406 = vpop.f32.mrb[0].mxu0
        %v407 = vadd.f32 %v314, %v406
        %v408 = vpop.f32.mrb[0].mxu0
        %409 = vmatprep.mubr.bf16.mxu0 0
        %410 = vmatmul.mubr.bf16.gmra.mrb[0].mxu0 %v347
        %v411 = vpop.f32.mrb[0].mxu0
        %v412 = vadd.f32 %v314, %v411
        %v413 = vpop.f32.mrb[0].mxu0
        %v414 = vpop.f32.mrb[0].mxu0
        %v415 = vadd.f32 %v314, %v414
        %v416 = vpop.f32.mrb[0].mxu0
        %417 = vmatprep.mubr.bf16.mxu0 0
        %418 = vmatmul.mubr.bf16.gmra.mrb[0].mxu0 %v350
        %v419 = vpop.f32.mrb[0].mxu0
        %v420 = vadd.f32 %v314, %v419
        %v421 = vpop.f32.mrb[0].mxu0
        %v422 = vpop.f32.mrb[0].mxu0
        %v423 = vadd.f32 %v314, %v422
        %v424 = vpop.f32.mrb[0].mxu0
        %425 = vmatprep.mubr.bf16.mxu0 0
        %426 = vmatmul.mubr.bf16.gmra.mrb[0].mxu0 %v353
        %v427 = vpop.f32.mrb[0].mxu0
        %v428 = vadd.f32 %v314, %v427
        %v429 = vpop.f32.mrb[0].mxu0
        %v430 = vpop.f32.mrb[0].mxu0
        %v431 = vadd.f32 %v314, %v430
        %v432 = vpop.f32.mrb[0].mxu0
        %433 = vmatprep.mubr.bf16.mxu0 0
        %434 = vmatmul.mubr.bf16.gmra.mrb[0].mxu0 %v356
        %v435 = vpop.f32.mrb[0].mxu0
        %v436 = vadd.f32 %v314, %v435
        %v437 = vpop.f32.mrb[0].mxu0
        %v438 = vpop.f32.mrb[0].mxu0
        %v439 = vadd.f32 %v314, %v438
        %v440 = vpop.f32.mrb[0].mxu0
        %441 = vmatprep.mubr.bf16.mxu0 0
        %442 = vmatmul.mubr.bf16.gmra.mrb[0].mxu0 %v359
        %v443 = vpop.f32.mrb[0].mxu0
        %v444 = vadd.f32 %v314, %v443
        %v445 = vpop.f32.mrb[0].mxu0
        %v446 = vpop.f32.mrb[0].mxu0
        %v447 = vadd.f32 %v314, %v446
        %v448 = vpop.f32.mrb[0].mxu0
        %449 = vdwg.mxu0
        %v450 = vmax.f32 %v396, 0.0
        %v451 = vmax.f32 %v399, 0.0
        %v452 = vmax.f32 %v404, 0.0
        %v453 = vmax.f32 %v407, 0.0
        %v454 = vmax.f32 %v412, 0.0
        %v455 = vmax.f32 %v415, 0.0
        %v456 = vmax.f32 %v420, 0.0
        %v457 = vmax.f32 %v423, 0.0
        %v458 = vmax.f32 %v428, 0.0
        %v459 = vmax.f32 %v431, 0.0
        %v460 = vmax.f32 %v436, 0.0
        %v461 = vmax.f32 %v439, 0.0
        %v462 = vmax.f32 %v444, 0.0
        %v463 = vmax.f32 %v447, 0.0
        %v464 = vld [vmem:[%s2] sm:$0xf]
        %v465 = vld [vmem:[%s2 + $0x4] sm:$0xf]
        %v466 = vld [vmem:[%s2 + $0x8] sm:$0xf]
        %v467 = vld [vmem:[%s2 + $0xc] sm:$0xf]
        %v468 = vld [vmem:[%s2 + $0x10] sm:$0xf]
        %v469 = vld [vmem:[%s2 + $0x14] sm:$0xf]
        %v470 = vld [vmem:[%s2 + $0x18] sm:$0xf]
        %v471 = vld [vmem:[%s2 + $0x1c] sm:$0xf]
        %v472 = vld [vmem:[%s2 + $0x20] sm:$0xf]
        %v473 = vld [vmem:[%s2 + $0x24] sm:$0xf]
        %v474 = vld [vmem:[%s2 + $0x28] sm:$0xf]
        %v475 = vld [vmem:[%s2 + $0x2c] sm:$0xf]
        %v476 = vld [vmem:[%s2 + $0x30] sm:$0xf]
        %v477 = vld [vmem:[%s2 + $0x34] sm:$0xf]
        %v478 = vld [vmem:[%s2 + $0x38] sm:$0xf]
        %v479 = vld [vmem:[%s2 + $0x3c] sm:$0xf]
        %v480 = vpack.c.bf16 %v451, %v450
        %v481 = vpack.c.bf16 %v453, %v452
        %v482 = vpack.c.bf16 %v455, %v454
        %v483 = vpack.c.bf16 %v457, %v456
        %v484 = vpack.c.bf16 %v459, %v458
        %v485 = vpack.c.bf16 %v461, %v460
        %v486 = vpack.c.bf16 %v463, %v462
        %v487 = vlaneseq
        %v488 = vshrl.u32 %v487, 7
        %v489 = vsub.s32 3, %v488
        %v490 = vrot.slane %v281, %v489
        %v507 = vunpack.c.l.b16 %v464
        %v508 = vunpack.c.l.b16 %v465
        %v509 = vunpack.c.l.b16 %v466
        %v510 = vunpack.c.l.b16 %v467
        %v511 = vunpack.c.l.b16 %v468
        %v512 = vunpack.c.l.b16 %v469
        %v513 = vunpack.c.l.b16 %v470
        %v514 = vunpack.c.l.b16 %v471
        %v515 = vunpack.c.l.b16 %v472
        %v516 = vunpack.c.l.b16 %v473
        %v517 = vunpack.c.l.b16 %v474
        %v518 = vunpack.c.l.b16 %v475
        %v519 = vunpack.c.l.b16 %v476
        %v520 = vunpack.c.l.b16 %v477
        %v521 = vunpack.c.l.b16 %v478
        %v522 = vunpack.c.l.b16 %v479
        %v523 = vpack.c.b16 %v508, %v507
        %v524 = vpack.c.b16 %v510, %v509
        %v525 = vpack.c.b16 %v512, %v511
        %v526 = vpack.c.b16 %v514, %v513
        %v527 = vpack.c.b16 %v516, %v515
        %v528 = vpack.c.b16 %v518, %v517
        %v529 = vpack.c.b16 %v520, %v519
        %v530 = vpack.c.b16 %v522, %v521
        %539 = vmatprep.subr.bf16.mxu0 0
        %540 = vmatpush1.bf16.msra.mxu0 %v523
        %541 = vmatprep.subr.bf16.mxu0 0
        %542 = vmatpush1.bf16.msra.mxu0 %v524
        %543 = vmatprep.subr.bf16.mxu0 0
        %544 = vmatpush1.bf16.msra.mxu0 %v525
        %545 = vmatprep.subr.bf16.mxu0 0
        %546 = vmatpush1.bf16.msra.mxu0 %v526
        %547 = vmatprep.subr.bf16.mxu0 0
        %548 = vmatpush1.bf16.msra.mxu0 %v527
        %549 = vmatprep.subr.bf16.mxu0 0
        %550 = vmatpush1.bf16.msra.mxu0 %v528
        %551 = vmatprep.subr.bf16.mxu0 0
        %552 = vmatpush1.bf16.msra.mxu0 %v529
        %553 = vmatprep.subr.bf16.mxu0 0
        %554 = vmatpush1.bf16.msra.mxu0 %v530
        %555 = vmatprep.subr.bf16.mxu0 0
        %556 = vmatpush1.bf16.msra.mxu0 0
        %557 = vmatprep.subr.bf16.mxu0 0
        %558 = vmatpush1.bf16.msra.mxu0 0
        %559 = vmatprep.subr.bf16.mxu0 0
        %560 = vmatpush1.bf16.msra.mxu0 0
        %561 = vmatprep.subr.bf16.mxu0 0
        %562 = vmatpush1.bf16.msra.mxu0 0
        %563 = vmatprep.subr.bf16.mxu0 0
        %564 = vmatpush1.bf16.msra.mxu0 0
        %565 = vmatprep.subr.bf16.mxu0 0
        %566 = vmatpush1.bf16.msra.mxu0 0
        %567 = vmatprep.subr.bf16.mxu0 0
        %568 = vmatpush1.bf16.msra.mxu0 0
        %569 = vmatprep.subr.bf16.mxu0 0
        %570 = vmatpush1.bf16.msra.mxu0 0
        %571 = vmatprep.mubr.bf16.mxu0 0
        %572 = vmatmul.mubr.bf16.gmra.mrb[0].mxu0 %v480
        %v573 = vpop.f32.mrb[0].mxu0
        %v574 = vadd.f32 %v490, %v573
        %v575 = vpop.f32.mrb[0].mxu0
        %v576 = vpop.f32.mrb[0].mxu0
        %v577 = vadd.f32 %v490, %v576
        %v578 = vpop.f32.mrb[0].mxu0
        %579 = vmatprep.mubr.bf16.mxu0 0
        %580 = vmatmul.mubr.bf16.gmra.mrb[0].mxu0 %v481
        %v581 = vpop.f32.mrb[0].mxu0
        %v582 = vadd.f32 %v490, %v581
        %v583 = vpop.f32.mrb[0].mxu0
        %v584 = vpop.f32.mrb[0].mxu0
        %v585 = vadd.f32 %v490, %v584
        %v586 = vpop.f32.mrb[0].mxu0
        %587 = vmatprep.mubr.bf16.mxu0 0
        %588 = vmatmul.mubr.bf16.gmra.mrb[0].mxu0 %v482
        %v589 = vpop.f32.mrb[0].mxu0
        %v590 = vadd.f32 %v490, %v589
        %v591 = vpop.f32.mrb[0].mxu0
        %v592 = vpop.f32.mrb[0].mxu0
        %v593 = vadd.f32 %v490, %v592
        %v594 = vpop.f32.mrb[0].mxu0
        %595 = vmatprep.mubr.bf16.mxu0 0
        %596 = vmatmul.mubr.bf16.gmra.mrb[0].mxu0 %v483
        %v597 = vpop.f32.mrb[0].mxu0
        %v598 = vadd.f32 %v490, %v597
        %v599 = vpop.f32.mrb[0].mxu0
        %v600 = vpop.f32.mrb[0].mxu0
        %v601 = vadd.f32 %v490, %v600
        %v602 = vpop.f32.mrb[0].mxu0
        %603 = vmatprep.mubr.bf16.mxu0 0
        %604 = vmatmul.mubr.bf16.gmra.mrb[0].mxu0 %v484
        %v605 = vpop.f32.mrb[0].mxu0
        %v606 = vadd.f32 %v490, %v605
        %v607 = vpop.f32.mrb[0].mxu0
        %v608 = vpop.f32.mrb[0].mxu0
        %v609 = vadd.f32 %v490, %v608
        %v610 = vpop.f32.mrb[0].mxu0
        %611 = vmatprep.mubr.bf16.mxu0 0
        %612 = vmatmul.mubr.bf16.gmra.mrb[0].mxu0 %v485
        %v613 = vpop.f32.mrb[0].mxu0
        %v614 = vadd.f32 %v490, %v613
        %v615 = vpop.f32.mrb[0].mxu0
        %v616 = vpop.f32.mrb[0].mxu0
        %v617 = vadd.f32 %v490, %v616
        %v618 = vpop.f32.mrb[0].mxu0
        %619 = vmatprep.mubr.bf16.mxu0 0
        %620 = vmatmul.mubr.bf16.gmra.mrb[0].mxu0 %v486
        %v621 = vpop.f32.mrb[0].mxu0
        %v622 = vadd.f32 %v490, %v621
        %v623 = vpop.f32.mrb[0].mxu0
        %v624 = vpop.f32.mrb[0].mxu0
        %v625 = vadd.f32 %v490, %v624
        %v626 = vpop.f32.mrb[0].mxu0
        %627 = vdwg.mxu0
        %v628 = vmax.f32 %v574, 0.0
        %v629 = vmax.f32 %v577, 0.0
        %v630 = vmax.f32 %v582, 0.0
        %v631 = vmax.f32 %v585, 0.0
        %v632 = vmax.f32 %v590, 0.0
        %v633 = vmax.f32 %v593, 0.0
        %v634 = vmax.f32 %v598, 0.0
        %v635 = vmax.f32 %v601, 0.0
        %v636 = vmax.f32 %v606, 0.0
        %v637 = vmax.f32 %v609, 0.0
        %v638 = vmax.f32 %v614, 0.0
        %v639 = vmax.f32 %v617, 0.0
        %v640 = vmax.f32 %v622, 0.0
        %v641 = vmax.f32 %v625, 0.0
        %s642 = scalar_lea.vmem %s2, 64
        %v643 = vld [vmem:[%s642] sm:$0xf]
        %v644 = vld [vmem:[%s642 + $0x4] sm:$0xf]
        %v645 = vld [vmem:[%s642 + $0x8] sm:$0xf]
        %v646 = vld [vmem:[%s642 + $0xc] sm:$0xf]
        %v647 = vld [vmem:[%s642 + $0x10] sm:$0xf]
        %v648 = vld [vmem:[%s642 + $0x14] sm:$0xf]
        %v649 = vld [vmem:[%s642 + $0x18] sm:$0xf]
        %v650 = vld [vmem:[%s642 + $0x1c] sm:$0xf]
        %v651 = vld [vmem:[%s642 + $0x20] sm:$0xf]
        %v652 = vld [vmem:[%s642 + $0x24] sm:$0xf]
        %v653 = vld [vmem:[%s642 + $0x28] sm:$0xf]
        %v654 = vld [vmem:[%s642 + $0x2c] sm:$0xf]
        %v655 = vld [vmem:[%s642 + $0x30] sm:$0xf]
        %v656 = vld [vmem:[%s642 + $0x34] sm:$0xf]
        %v657 = vld [vmem:[%s642 + $0x38] sm:$0xf]
        %v658 = vld [vmem:[%s642 + $0x3c] sm:$0xf]
        %v659 = vpack.c.bf16 %v629, %v628
        %v660 = vpack.c.bf16 %v631, %v630
        %v661 = vpack.c.bf16 %v633, %v632
        %v662 = vpack.c.bf16 %v635, %v634
        %v663 = vpack.c.bf16 %v637, %v636
        %v664 = vpack.c.bf16 %v639, %v638
        %v665 = vpack.c.bf16 %v641, %v640
        %v666 = vlaneseq
        %v667 = vshrl.u32 %v666, 7
        %v668 = vsub.s32 4, %v667
        %v669 = vrot.slane %v281, %v668
        %v686 = vunpack.c.l.b16 %v643
        %v687 = vunpack.c.l.b16 %v644
        %v688 = vunpack.c.l.b16 %v645
        %v689 = vunpack.c.l.b16 %v646
        %v690 = vunpack.c.l.b16 %v647
        %v691 = vunpack.c.l.b16 %v648
        %v692 = vunpack.c.l.b16 %v649
        %v693 = vunpack.c.l.b16 %v650
        %v694 = vunpack.c.l.b16 %v651
        %v695 = vunpack.c.l.b16 %v652
        %v696 = vunpack.c.l.b16 %v653
        %v697 = vunpack.c.l.b16 %v654
        %v698 = vunpack.c.l.b16 %v655
        %v699 = vunpack.c.l.b16 %v656
        %v700 = vunpack.c.l.b16 %v657
        %v701 = vunpack.c.l.b16 %v658
        %v702 = vpack.c.b16 %v687, %v686
        %v703 = vpack.c.b16 %v689, %v688
        %v704 = vpack.c.b16 %v691, %v690
        %v705 = vpack.c.b16 %v693, %v692
        %v706 = vpack.c.b16 %v695, %v694
        %v707 = vpack.c.b16 %v697, %v696
        %v708 = vpack.c.b16 %v699, %v698
        %v709 = vpack.c.b16 %v701, %v700
        %718 = vmatprep.subr.bf16.mxu0 0
        %719 = vmatpush1.bf16.msra.mxu0 %v702
        %720 = vmatprep.subr.bf16.mxu0 0
        %721 = vmatpush1.bf16.msra.mxu0 %v703
        %722 = vmatprep.subr.bf16.mxu0 0
        %723 = vmatpush1.bf16.msra.mxu0 %v704
        %724 = vmatprep.subr.bf16.mxu0 0
        %725 = vmatpush1.bf16.msra.mxu0 %v705
        %726 = vmatprep.subr.bf16.mxu0 0
        %727 = vmatpush1.bf16.msra.mxu0 %v706
        %728 = vmatprep.subr.bf16.mxu0 0
        %729 = vmatpush1.bf16.msra.mxu0 %v707
        %730 = vmatprep.subr.bf16.mxu0 0
        %731 = vmatpush1.bf16.msra.mxu0 %v708
        %732 = vmatprep.subr.bf16.mxu0 0
        %733 = vmatpush1.bf16.msra.mxu0 %v709
        %734 = vmatprep.subr.bf16.mxu0 0
        %735 = vmatpush1.bf16.msra.mxu0 0
        %736 = vmatprep.subr.bf16.mxu0 0
        %737 = vmatpush1.bf16.msra.mxu0 0
        %738 = vmatprep.subr.bf16.mxu0 0
        %739 = vmatpush1.bf16.msra.mxu0 0
        %740 = vmatprep.subr.bf16.mxu0 0
        %741 = vmatpush1.bf16.msra.mxu0 0
        %742 = vmatprep.subr.bf16.mxu0 0
        %743 = vmatpush1.bf16.msra.mxu0 0
        %744 = vmatprep.subr.bf16.mxu0 0
        %745 = vmatpush1.bf16.msra.mxu0 0
        %746 = vmatprep.subr.bf16.mxu0 0
        %747 = vmatpush1.bf16.msra.mxu0 0
        %748 = vmatprep.subr.bf16.mxu0 0
        %749 = vmatpush1.bf16.msra.mxu0 0
        %750 = vmatprep.mubr.bf16.mxu0 0
        %751 = vmatmul.mubr.bf16.gmra.mrb[0].mxu0 %v659
        %v752 = vpop.f32.mrb[0].mxu0
        %v753 = vadd.f32 %v669, %v752
        %v754 = vpop.f32.mrb[0].mxu0
        %v755 = vpop.f32.mrb[0].mxu0
        %v756 = vadd.f32 %v669, %v755
        %v757 = vpop.f32.mrb[0].mxu0
        %758 = vmatprep.mubr.bf16.mxu0 0
        %759 = vmatmul.mubr.bf16.gmra.mrb[0].mxu0 %v660
        %v760 = vpop.f32.mrb[0].mxu0
        %v761 = vadd.f32 %v669, %v760
        %v762 = vpop.f32.mrb[0].mxu0
        %v763 = vpop.f32.mrb[0].mxu0
        %v764 = vadd.f32 %v669, %v763
        %v765 = vpop.f32.mrb[0].mxu0
        %766 = vmatprep.mubr.bf16.mxu0 0
        %767 = vmatmul.mubr.bf16.gmra.mrb[0].mxu0 %v661
        %v768 = vpop.f32.mrb[0].mxu0
        %v769 = vadd.f32 %v669, %v768
        %v770 = vpop.f32.mrb[0].mxu0
        %v771 = vpop.f32.mrb[0].mxu0
        %v772 = vadd.f32 %v669, %v771
        %v773 = vpop.f32.mrb[0].mxu0
        %774 = vmatprep.mubr.bf16.mxu0 0
        %775 = vmatmul.mubr.bf16.gmra.mrb[0].mxu0 %v662
        %v776 = vpop.f32.mrb[0].mxu0
        %v777 = vadd.f32 %v669, %v776
        %v778 = vpop.f32.mrb[0].mxu0
        %v779 = vpop.f32.mrb[0].mxu0
        %v780 = vadd.f32 %v669, %v779
        %v781 = vpop.f32.mrb[0].mxu0
        %782 = vmatprep.mubr.bf16.mxu0 0
        %783 = vmatmul.mubr.bf16.gmra.mrb[0].mxu0 %v663
        %v784 = vpop.f32.mrb[0].mxu0
        %v785 = vadd.f32 %v669, %v784
        %v786 = vpop.f32.mrb[0].mxu0
        %v787 = vpop.f32.mrb[0].mxu0
        %v788 = vadd.f32 %v669, %v787
        %v789 = vpop.f32.mrb[0].mxu0
        %790 = vmatprep.mubr.bf16.mxu0 0
        %791 = vmatmul.mubr.bf16.gmra.mrb[0].mxu0 %v664
        %v792 = vpop.f32.mrb[0].mxu0
        %v793 = vadd.f32 %v669, %v792
        %v794 = vpop.f32.mrb[0].mxu0
        %v795 = vpop.f32.mrb[0].mxu0
        %v796 = vadd.f32 %v669, %v795
        %v797 = vpop.f32.mrb[0].mxu0
        %798 = vmatprep.mubr.bf16.mxu0 0
        %799 = vmatmul.mubr.bf16.gmra.mrb[0].mxu0 %v665
        %v800 = vpop.f32.mrb[0].mxu0
        %v801 = vadd.f32 %v669, %v800
        %v802 = vpop.f32.mrb[0].mxu0
        %v803 = vpop.f32.mrb[0].mxu0
        %v804 = vadd.f32 %v669, %v803
        %v805 = vpop.f32.mrb[0].mxu0
        %806 = vdwg.mxu0
        %v807 = vmax.f32 %v753, 0.0
        %v808 = vmax.f32 %v756, 0.0
        %v809 = vmax.f32 %v761, 0.0
        %v810 = vmax.f32 %v764, 0.0
        %v811 = vmax.f32 %v769, 0.0
        %v812 = vmax.f32 %v772, 0.0
        %v813 = vmax.f32 %v777, 0.0
        %v814 = vmax.f32 %v780, 0.0
        %v815 = vmax.f32 %v785, 0.0
        %v816 = vmax.f32 %v788, 0.0
        %v817 = vmax.f32 %v793, 0.0
        %v818 = vmax.f32 %v796, 0.0
        %v819 = vmax.f32 %v801, 0.0
        %v820 = vmax.f32 %v804, 0.0
        %v821 = vld [vmem:[%s3] sm:$0xf]
        %v822 = vld [vmem:[%s3 + $0x4] sm:$0xf]
        %v823 = vld [vmem:[%s3 + $0x8] sm:$0xf]
        %v824 = vld [vmem:[%s3 + $0xc] sm:$0xf]
        %v825 = vld [vmem:[%s3 + $0x10] sm:$0xf]
        %v826 = vld [vmem:[%s3 + $0x14] sm:$0xf]
        %v827 = vld [vmem:[%s3 + $0x18] sm:$0xf]
        %v828 = vld [vmem:[%s3 + $0x1c] sm:$0xf]
        %v829 = vld [vmem:[%s3 + $0x20] sm:$0xf]
        %v830 = vld [vmem:[%s3 + $0x24] sm:$0xf]
        %v831 = vld [vmem:[%s3 + $0x28] sm:$0xf]
        %v832 = vld [vmem:[%s3 + $0x2c] sm:$0xf]
        %v833 = vld [vmem:[%s3 + $0x30] sm:$0xf]
        %v834 = vld [vmem:[%s3 + $0x34] sm:$0xf]
        %v835 = vld [vmem:[%s3 + $0x38] sm:$0xf]
        %v836 = vld [vmem:[%s3 + $0x3c] sm:$0xf]
        %v837 = vpack.c.bf16 %v808, %v807
        %v838 = vpack.c.bf16 %v810, %v809
        %v839 = vpack.c.bf16 %v812, %v811
        %v840 = vpack.c.bf16 %v814, %v813
        %v841 = vpack.c.bf16 %v816, %v815
        %v842 = vpack.c.bf16 %v818, %v817
        %v843 = vpack.c.bf16 %v820, %v819
        %v844 = vlaneseq
        %v845 = vshrl.u32 %v844, 7
        %v846 = vsub.s32 1, %v845
        %v847 = vrot.slane %v281, %v846
        %v864 = vunpack.c.l.b16 %v821
        %v865 = vunpack.c.l.b16 %v822
        %v866 = vunpack.c.l.b16 %v823
        %v867 = vunpack.c.l.b16 %v824
        %v868 = vunpack.c.l.b16 %v825
        %v869 = vunpack.c.l.b16 %v826
        %v870 = vunpack.c.l.b16 %v827
        %v871 = vunpack.c.l.b16 %v828
        %v872 = vunpack.c.l.b16 %v829
        %v873 = vunpack.c.l.b16 %v830
        %v874 = vunpack.c.l.b16 %v831
        %v875 = vunpack.c.l.b16 %v832
        %v876 = vunpack.c.l.b16 %v833
        %v877 = vunpack.c.l.b16 %v834
        %v878 = vunpack.c.l.b16 %v835
        %v879 = vunpack.c.l.b16 %v836
        %v880 = vpack.c.b16 %v865, %v864
        %v881 = vpack.c.b16 %v867, %v866
        %v882 = vpack.c.b16 %v869, %v868
        %v883 = vpack.c.b16 %v871, %v870
        %v884 = vpack.c.b16 %v873, %v872
        %v885 = vpack.c.b16 %v875, %v874
        %v886 = vpack.c.b16 %v877, %v876
        %v887 = vpack.c.b16 %v879, %v878
        %896 = vmatprep.subr.bf16.mxu0 0
        %897 = vmatpush1.bf16.msra.mxu0 %v880
        %898 = vmatprep.subr.bf16.mxu0 0
        %899 = vmatpush1.bf16.msra.mxu0 %v881
        %900 = vmatprep.subr.bf16.mxu0 0
        %901 = vmatpush1.bf16.msra.mxu0 %v882
        %902 = vmatprep.subr.bf16.mxu0 0
        %903 = vmatpush1.bf16.msra.mxu0 %v883
        %904 = vmatprep.subr.bf16.mxu0 0
        %905 = vmatpush1.bf16.msra.mxu0 %v884
        %906 = vmatprep.subr.bf16.mxu0 0
        %907 = vmatpush1.bf16.msra.mxu0 %v885
        %908 = vmatprep.subr.bf16.mxu0 0
        %909 = vmatpush1.bf16.msra.mxu0 %v886
        %910 = vmatprep.subr.bf16.mxu0 0
        %911 = vmatpush1.bf16.msra.mxu0 %v887
        %912 = vmatprep.subr.bf16.mxu0 0
        %913 = vmatpush1.bf16.msra.mxu0 0
        %914 = vmatprep.subr.bf16.mxu0 0
        %915 = vmatpush1.bf16.msra.mxu0 0
        %916 = vmatprep.subr.bf16.mxu0 0
        %917 = vmatpush1.bf16.msra.mxu0 0
        %918 = vmatprep.subr.bf16.mxu0 0
        %919 = vmatpush1.bf16.msra.mxu0 0
        %920 = vmatprep.subr.bf16.mxu0 0
        %921 = vmatpush1.bf16.msra.mxu0 0
        %922 = vmatprep.subr.bf16.mxu0 0
        %923 = vmatpush1.bf16.msra.mxu0 0
        %924 = vmatprep.subr.bf16.mxu0 0
        %925 = vmatpush1.bf16.msra.mxu0 0
        %926 = vmatprep.subr.bf16.mxu0 0
        %927 = vmatpush1.bf16.msra.mxu0 0
        %928 = vmatprep.mubr.bf16.mxu0 0
        %929 = vmatmul.mubr.bf16.gmra.mrb[0].mxu0 %v837
        %v930 = vpop.f32.mrb[0].mxu0
        %v931 = vadd.f32 %v847, %v930
        %v932 = vpop.f32.mrb[0].mxu0
        %v933 = vpop.f32.mrb[0].mxu0
        %v934 = vadd.f32 %v847, %v933
        %v935 = vpop.f32.mrb[0].mxu0
        %936 = vmatprep.mubr.bf16.mxu0 0
        %937 = vmatmul.mubr.bf16.gmra.mrb[0].mxu0 %v838
        %v938 = vpop.f32.mrb[0].mxu0
        %v939 = vadd.f32 %v847, %v938
        %v940 = vpop.f32.mrb[0].mxu0
        %v941 = vpop.f32.mrb[0].mxu0
        %v942 = vadd.f32 %v847, %v941
        %v943 = vpop.f32.mrb[0].mxu0
        %944 = vmatprep.mubr.bf16.mxu0 0
        %945 = vmatmul.mubr.bf16.gmra.mrb[0].mxu0 %v839
        %v946 = vpop.f32.mrb[0].mxu0
        %v947 = vadd.f32 %v847, %v946
        %v948 = vpop.f32.mrb[0].mxu0
        %v949 = vpop.f32.mrb[0].mxu0
        %v950 = vadd.f32 %v847, %v949
        %v951 = vpop.f32.mrb[0].mxu0
        %952 = vmatprep.mubr.bf16.mxu0 0
        %953 = vmatmul.mubr.bf16.gmra.mrb[0].mxu0 %v840
        %v954 = vpop.f32.mrb[0].mxu0
        %v955 = vadd.f32 %v847, %v954
        %v956 = vpop.f32.mrb[0].mxu0
        %v957 = vpop.f32.mrb[0].mxu0
        %v958 = vadd.f32 %v847, %v957
        %v959 = vpop.f32.mrb[0].mxu0
        %960 = vmatprep.mubr.bf16.mxu0 0
        %961 = vmatmul.mubr.bf16.gmra.mrb[0].mxu0 %v841
        %v962 = vpop.f32.mrb[0].mxu0
        %v963 = vadd.f32 %v847, %v962
        %v964 = vpop.f32.mrb[0].mxu0
        %v965 = vpop.f32.mrb[0].mxu0
        %v966 = vadd.f32 %v847, %v965
        %v967 = vpop.f32.mrb[0].mxu0
        %968 = vmatprep.mubr.bf16.mxu0 0
        %969 = vmatmul.mubr.bf16.gmra.mrb[0].mxu0 %v842
        %v970 = vpop.f32.mrb[0].mxu0
        %v971 = vadd.f32 %v847, %v970
        %v972 = vpop.f32.mrb[0].mxu0
        %v973 = vpop.f32.mrb[0].mxu0
        %v974 = vadd.f32 %v847, %v973
        %v975 = vpop.f32.mrb[0].mxu0
        %976 = vmatprep.mubr.bf16.mxu0 0
        %977 = vmatmul.mubr.bf16.gmra.mrb[0].mxu0 %v843
        %v978 = vpop.f32.mrb[0].mxu0
        %v979 = vadd.f32 %v847, %v978
        %v980 = vpop.f32.mrb[0].mxu0
        %v981 = vpop.f32.mrb[0].mxu0
        %v982 = vadd.f32 %v847, %v981
        %v983 = vpop.f32.mrb[0].mxu0
        %984 = vdwg.mxu0
        %v985 = vld [vmem:[%s4] sm:$0xf]
        %v986 = vld [vmem:[%s4 + $0x4] sm:$0xf]
        %v987 = vld [vmem:[%s4 + $0x8] sm:$0xf]
        %v988 = vld [vmem:[%s4 + $0xc] sm:$0xf]
        %v989 = vld [vmem:[%s4 + $0x10] sm:$0xf]
        %v990 = vld [vmem:[%s4 + $0x14] sm:$0xf]
        %v991 = vld [vmem:[%s4 + $0x18] sm:$0xf]
        %v992 = vld [vmem:[%s4 + $0x1c] sm:$0xf]
        %v993 = vld [vmem:[%s4 + $0x20] sm:$0xf]
        %v994 = vld [vmem:[%s4 + $0x24] sm:$0xf]
        %v995 = vld [vmem:[%s4 + $0x28] sm:$0xf]
        %v996 = vld [vmem:[%s4 + $0x2c] sm:$0xf]
        %v997 = vld [vmem:[%s4 + $0x30] sm:$0xf]
        %v998 = vld [vmem:[%s4 + $0x34] sm:$0xf]
        %v999 = vld [vmem:[%s4 + $0x38] sm:$0xf]
        %v1000 = vld [vmem:[%s4 + $0x3c] sm:$0xf]
        %v1017 = vunpack.c.l.b16 %v985
        %v1018 = vunpack.c.l.b16 %v986
        %v1019 = vunpack.c.l.b16 %v987
        %v1020 = vunpack.c.l.b16 %v988
        %v1021 = vunpack.c.l.b16 %v989
        %v1022 = vunpack.c.l.b16 %v990
        %v1023 = vunpack.c.l.b16 %v991
        %v1024 = vunpack.c.l.b16 %v992
        %v1025 = vunpack.c.l.b16 %v993
        %v1026 = vunpack.c.l.b16 %v994
        %v1027 = vunpack.c.l.b16 %v995
        %v1028 = vunpack.c.l.b16 %v996
        %v1029 = vunpack.c.l.b16 %v997
        %v1030 = vunpack.c.l.b16 %v998
        %v1031 = vunpack.c.l.b16 %v999
        %v1032 = vunpack.c.l.b16 %v1000
        %v1033 = vpack.c.b16 %v1018, %v1017
        %v1034 = vpack.c.b16 %v1020, %v1019
        %v1035 = vpack.c.b16 %v1022, %v1021
        %v1036 = vpack.c.b16 %v1024, %v1023
        %v1037 = vpack.c.b16 %v1026, %v1025
        %v1038 = vpack.c.b16 %v1028, %v1027
        %v1039 = vpack.c.b16 %v1030, %v1029
        %v1040 = vpack.c.b16 %v1032, %v1031
        %1049 = vmatprep.subr.bf16.mxu0 0
        %1050 = vmatpush1.bf16.msra.mxu0 %v1033
        %1051 = vmatprep.subr.bf16.mxu0 0
        %1052 = vmatpush1.bf16.msra.mxu0 %v1034
        %1053 = vmatprep.subr.bf16.mxu0 0
        %1054 = vmatpush1.bf16.msra.mxu0 %v1035
        %1055 = vmatprep.subr.bf16.mxu0 0
        %1056 = vmatpush1.bf16.msra.mxu0 %v1036
        %1057 = vmatprep.subr.bf16.mxu0 0
        %1058 = vmatpush1.bf16.msra.mxu0 %v1037
        %1059 = vmatprep.subr.bf16.mxu0 0
        %1060 = vmatpush1.bf16.msra.mxu0 %v1038
        %1061 = vmatprep.subr.bf16.mxu0 0
        %1062 = vmatpush1.bf16.msra.mxu0 %v1039
        %1063 = vmatprep.subr.bf16.mxu0 0
        %1064 = vmatpush1.bf16.msra.mxu0 %v1040
        %1065 = vmatprep.subr.bf16.mxu0 0
        %1066 = vmatpush1.bf16.msra.mxu0 0
        %1067 = vmatprep.subr.bf16.mxu0 0
        %1068 = vmatpush1.bf16.msra.mxu0 0
        %1069 = vmatprep.subr.bf16.mxu0 0
        %1070 = vmatpush1.bf16.msra.mxu0 0
        %1071 = vmatprep.subr.bf16.mxu0 0
        %1072 = vmatpush1.bf16.msra.mxu0 0
        %1073 = vmatprep.subr.bf16.mxu0 0
        %1074 = vmatpush1.bf16.msra.mxu0 0
        %1075 = vmatprep.subr.bf16.mxu0 0
        %1076 = vmatpush1.bf16.msra.mxu0 0
        %1077 = vmatprep.subr.bf16.mxu0 0
        %1078 = vmatpush1.bf16.msra.mxu0 0
        %1079 = vmatprep.subr.bf16.mxu0 0
        %1080 = vmatpush1.bf16.msra.mxu0 0
        %1081 = vmatprep.mubr.bf16.mxu0 0
        %1082 = vmatmul.mubr.bf16.gmra.mrb[0].mxu0 %v480
        %v1083 = vpop.f32.mrb[0].mxu0
        %v1084 = vadd.f32 0.0, %v1083
        %v1085 = vpop.f32.mrb[0].mxu0
        %v1086 = vpop.f32.mrb[0].mxu0
        %v1087 = vadd.f32 0.0, %v1086
        %v1088 = vpop.f32.mrb[0].mxu0
        %1089 = vmatprep.mubr.bf16.mxu0 0
        %1090 = vmatmul.mubr.bf16.gmra.mrb[0].mxu0 %v481
        %v1091 = vpop.f32.mrb[0].mxu0
        %v1092 = vadd.f32 0.0, %v1091
        %v1093 = vpop.f32.mrb[0].mxu0
        %v1094 = vpop.f32.mrb[0].mxu0
        %v1095 = vadd.f32 0.0, %v1094
        %v1096 = vpop.f32.mrb[0].mxu0
        %1097 = vmatprep.mubr.bf16.mxu0 0
        %1098 = vmatmul.mubr.bf16.gmra.mrb[0].mxu0 %v482
        %v1099 = vpop.f32.mrb[0].mxu0
        %v1100 = vadd.f32 0.0, %v1099
        %v1101 = vpop.f32.mrb[0].mxu0
        %v1102 = vpop.f32.mrb[0].mxu0
        %v1103 = vadd.f32 0.0, %v1102
        %v1104 = vpop.f32.mrb[0].mxu0
        %1105 = vmatprep.mubr.bf16.mxu0 0
        %1106 = vmatmul.mubr.bf16.gmra.mrb[0].mxu0 %v483
        %v1107 = vpop.f32.mrb[0].mxu0
        %v1108 = vadd.f32 0.0, %v1107
        %v1109 = vpop.f32.mrb[0].mxu0
        %v1110 = vpop.f32.mrb[0].mxu0
        %v1111 = vadd.f32 0.0, %v1110
        %v1112 = vpop.f32.mrb[0].mxu0
        %1113 = vmatprep.mubr.bf16.mxu0 0
        %1114 = vmatmul.mubr.bf16.gmra.mrb[0].mxu0 %v484
        %v1115 = vpop.f32.mrb[0].mxu0
        %v1116 = vadd.f32 0.0, %v1115
        %v1117 = vpop.f32.mrb[0].mxu0
        %v1118 = vpop.f32.mrb[0].mxu0
        %v1119 = vadd.f32 0.0, %v1118
        %v1120 = vpop.f32.mrb[0].mxu0
        %1121 = vmatprep.mubr.bf16.mxu0 0
        %1122 = vmatmul.mubr.bf16.gmra.mrb[0].mxu0 %v485
        %v1123 = vpop.f32.mrb[0].mxu0
        %v1124 = vadd.f32 0.0, %v1123
        %v1125 = vpop.f32.mrb[0].mxu0
        %v1126 = vpop.f32.mrb[0].mxu0
        %v1127 = vadd.f32 0.0, %v1126
        %v1128 = vpop.f32.mrb[0].mxu0
        %1129 = vmatprep.mubr.bf16.mxu0 0
        %1130 = vmatmul.mubr.bf16.gmra.mrb[0].mxu0 %v486
        %v1131 = vpop.f32.mrb[0].mxu0
        %v1132 = vadd.f32 0.0, %v1131
        %v1133 = vpop.f32.mrb[0].mxu0
        %v1134 = vpop.f32.mrb[0].mxu0
        %v1135 = vadd.f32 0.0, %v1134
        %v1136 = vpop.f32.mrb[0].mxu0
        %1137 = vdwg.mxu0
        %v1138 = vadd.f32 %v931, %v1084
        %v1139 = vadd.f32 %v934, %v1087
        %v1140 = vadd.f32 %v939, %v1092
        %v1141 = vadd.f32 %v942, %v1095
        %v1142 = vadd.f32 %v947, %v1100
        %v1143 = vadd.f32 %v950, %v1103
        %v1144 = vadd.f32 %v955, %v1108
        %v1145 = vadd.f32 %v958, %v1111
        %v1146 = vadd.f32 %v963, %v1116
        %v1147 = vadd.f32 %v966, %v1119
        %v1148 = vadd.f32 %v971, %v1124
        %v1149 = vadd.f32 %v974, %v1127
        %v1150 = vadd.f32 %v979, %v1132
        %v1151 = vadd.f32 %v982, %v1135
        %v1152 = vmax.f32 %v1138, 0.0
        %v1153 = vmax.f32 %v1139, 0.0
        %v1154 = vmax.f32 %v1140, 0.0
        %v1155 = vmax.f32 %v1141, 0.0
        %v1156 = vmax.f32 %v1142, 0.0
        %v1157 = vmax.f32 %v1143, 0.0
        %v1158 = vmax.f32 %v1144, 0.0
        %v1159 = vmax.f32 %v1145, 0.0
        %v1160 = vmax.f32 %v1146, 0.0
        %v1161 = vmax.f32 %v1147, 0.0
        %v1162 = vmax.f32 %v1148, 0.0
        %v1163 = vmax.f32 %v1149, 0.0
        %v1164 = vmax.f32 %v1150, 0.0
        %v1165 = vmax.f32 %v1151, 0.0
        %v1166 = vld [vmem:[%s5] sm:$0xf]
        %v1167 = vld [vmem:[%s5 + $0x4] sm:$0xf]
        %v1168 = vld [vmem:[%s5 + $0x8] sm:$0xf]
        %v1169 = vld [vmem:[%s5 + $0xc] sm:$0xf]
        %v1170 = vld [vmem:[%s5 + $0x10] sm:$0xf]
        %v1171 = vld [vmem:[%s5 + $0x14] sm:$0xf]
        %v1172 = vld [vmem:[%s5 + $0x18] sm:$0xf]
        %v1173 = vld [vmem:[%s5 + $0x1c] sm:$0xf]
        %v1174 = vld [vmem:[%s5 + $0x20] sm:$0xf]
        %v1175 = vld [vmem:[%s5 + $0x24] sm:$0xf]
        %v1176 = vld [vmem:[%s5 + $0x28] sm:$0xf]
        %v1177 = vld [vmem:[%s5 + $0x2c] sm:$0xf]
        %v1178 = vld [vmem:[%s5 + $0x30] sm:$0xf]
        %v1179 = vld [vmem:[%s5 + $0x34] sm:$0xf]
        %v1180 = vld [vmem:[%s5 + $0x38] sm:$0xf]
        %v1181 = vld [vmem:[%s5 + $0x3c] sm:$0xf]
        %v1182 = vpack.c.bf16 %v1153, %v1152
        %v1183 = vpack.c.bf16 %v1155, %v1154
        %v1184 = vpack.c.bf16 %v1157, %v1156
        %v1185 = vpack.c.bf16 %v1159, %v1158
        %v1186 = vpack.c.bf16 %v1161, %v1160
        %v1187 = vpack.c.bf16 %v1163, %v1162
        %v1188 = vpack.c.bf16 %v1165, %v1164
        %v1189 = vlaneseq
        %v1190 = vshrl.u32 %v1189, 7
        %v1191 = vsub.s32 2, %v1190
        %v1192 = vrot.slane %v281, %v1191
        %v1209 = vunpack.c.l.b16 %v1166
        %v1210 = vunpack.c.l.b16 %v1167
        %v1211 = vunpack.c.l.b16 %v1168
        %v1212 = vunpack.c.l.b16 %v1169
        %v1213 = vunpack.c.l.b16 %v1170
        %v1214 = vunpack.c.l.b16 %v1171
        %v1215 = vunpack.c.l.b16 %v1172
        %v1216 = vunpack.c.l.b16 %v1173
        %v1217 = vunpack.c.l.b16 %v1174
        %v1218 = vunpack.c.l.b16 %v1175
        %v1219 = vunpack.c.l.b16 %v1176
        %v1220 = vunpack.c.l.b16 %v1177
        %v1221 = vunpack.c.l.b16 %v1178
        %v1222 = vunpack.c.l.b16 %v1179
        %v1223 = vunpack.c.l.b16 %v1180
        %v1224 = vunpack.c.l.b16 %v1181
        %v1225 = vpack.c.b16 %v1210, %v1209
        %v1226 = vpack.c.b16 %v1212, %v1211
        %v1227 = vpack.c.b16 %v1214, %v1213
        %v1228 = vpack.c.b16 %v1216, %v1215
        %v1229 = vpack.c.b16 %v1218, %v1217
        %v1230 = vpack.c.b16 %v1220, %v1219
        %v1231 = vpack.c.b16 %v1222, %v1221
        %v1232 = vpack.c.b16 %v1224, %v1223
        %1241 = vmatprep.subr.bf16.mxu0 0
        %1242 = vmatpush1.bf16.msra.mxu0 %v1225
        %1243 = vmatprep.subr.bf16.mxu0 0
        %1244 = vmatpush1.bf16.msra.mxu0 %v1226
        %1245 = vmatprep.subr.bf16.mxu0 0
        %1246 = vmatpush1.bf16.msra.mxu0 %v1227
        %1247 = vmatprep.subr.bf16.mxu0 0
        %1248 = vmatpush1.bf16.msra.mxu0 %v1228
        %1249 = vmatprep.subr.bf16.mxu0 0
        %1250 = vmatpush1.bf16.msra.mxu0 %v1229
        %1251 = vmatprep.subr.bf16.mxu0 0
        %1252 = vmatpush1.bf16.msra.mxu0 %v1230
        %1253 = vmatprep.subr.bf16.mxu0 0
        %1254 = vmatpush1.bf16.msra.mxu0 %v1231
        %1255 = vmatprep.subr.bf16.mxu0 0
        %1256 = vmatpush1.bf16.msra.mxu0 %v1232
        %1257 = vmatprep.subr.bf16.mxu0 0
        %1258 = vmatpush1.bf16.msra.mxu0 0
        %1259 = vmatprep.subr.bf16.mxu0 0
        %1260 = vmatpush1.bf16.msra.mxu0 0
        %1261 = vmatprep.subr.bf16.mxu0 0
        %1262 = vmatpush1.bf16.msra.mxu0 0
        %1263 = vmatprep.subr.bf16.mxu0 0
        %1264 = vmatpush1.bf16.msra.mxu0 0
        %1265 = vmatprep.subr.bf16.mxu0 0
        %1266 = vmatpush1.bf16.msra.mxu0 0
        %1267 = vmatprep.subr.bf16.mxu0 0
        %1268 = vmatpush1.bf16.msra.mxu0 0
        %1269 = vmatprep.subr.bf16.mxu0 0
        %1270 = vmatpush1.bf16.msra.mxu0 0
        %1271 = vmatprep.subr.bf16.mxu0 0
        %1272 = vmatpush1.bf16.msra.mxu0 0
        %1273 = vmatprep.mubr.bf16.mxu0 0
        %1274 = vmatmul.mubr.bf16.gmra.mrb[0].mxu0 %v1182
        %v1275 = vpop.f32.mrb[0].mxu0
        %v1276 = vadd.f32 %v1192, %v1275
        %v1277 = vpop.f32.mrb[0].mxu0
        %v1278 = vpop.f32.mrb[0].mxu0
        %v1279 = vadd.f32 %v1192, %v1278
        %v1280 = vpop.f32.mrb[0].mxu0
        %1281 = vmatprep.mubr.bf16.mxu0 0
        %1282 = vmatmul.mubr.bf16.gmra.mrb[0].mxu0 %v1183
        %v1283 = vpop.f32.mrb[0].mxu0
        %v1284 = vadd.f32 %v1192, %v1283
        %v1285 = vpop.f32.mrb[0].mxu0
        %v1286 = vpop.f32.mrb[0].mxu0
        %v1287 = vadd.f32 %v1192, %v1286
        %v1288 = vpop.f32.mrb[0].mxu0
        %1289 = vmatprep.mubr.bf16.mxu0 0
        %1290 = vmatmul.mubr.bf16.gmra.mrb[0].mxu0 %v1184
        %v1291 = vpop.f32.mrb[0].mxu0
        %v1292 = vadd.f32 %v1192, %v1291
        %v1293 = vpop.f32.mrb[0].mxu0
        %v1294 = vpop.f32.mrb[0].mxu0
        %v1295 = vadd.f32 %v1192, %v1294
        %v1296 = vpop.f32.mrb[0].mxu0
        %1297 = vmatprep.mubr.bf16.mxu0 0
        %1298 = vmatmul.mubr.bf16.gmra.mrb[0].mxu0 %v1185
        %v1299 = vpop.f32.mrb[0].mxu0
        %v1300 = vadd.f32 %v1192, %v1299
        %v1301 = vpop.f32.mrb[0].mxu0
        %v1302 = vpop.f32.mrb[0].mxu0
        %v1303 = vadd.f32 %v1192, %v1302
        %v1304 = vpop.f32.mrb[0].mxu0
        %1305 = vmatprep.mubr.bf16.mxu0 0
        %1306 = vmatmul.mubr.bf16.gmra.mrb[0].mxu0 %v1186
        %v1307 = vpop.f32.mrb[0].mxu0
        %v1308 = vadd.f32 %v1192, %v1307
        %v1309 = vpop.f32.mrb[0].mxu0
        %v1310 = vpop.f32.mrb[0].mxu0
        %v1311 = vadd.f32 %v1192, %v1310
        %v1312 = vpop.f32.mrb[0].mxu0
        %1313 = vmatprep.mubr.bf16.mxu0 0
        %1314 = vmatmul.mubr.bf16.gmra.mrb[0].mxu0 %v1187
        %v1315 = vpop.f32.mrb[0].mxu0
        %v1316 = vadd.f32 %v1192, %v1315
        %v1317 = vpop.f32.mrb[0].mxu0
        %v1318 = vpop.f32.mrb[0].mxu0
        %v1319 = vadd.f32 %v1192, %v1318
        %v1320 = vpop.f32.mrb[0].mxu0
        %1321 = vmatprep.mubr.bf16.mxu0 0
        %1322 = vmatmul.mubr.bf16.gmra.mrb[0].mxu0 %v1188
        %v1323 = vpop.f32.mrb[0].mxu0
        %v1324 = vadd.f32 %v1192, %v1323
        %v1325 = vpop.f32.mrb[0].mxu0
        %v1326 = vpop.f32.mrb[0].mxu0
        %v1327 = vadd.f32 %v1192, %v1326
        %v1328 = vpop.f32.mrb[0].mxu0
        %1329 = vdwg.mxu0
        %v1330 = vtanh.pop %v1276
        %v1331 = vtanh.pop %v1279
        %v1332 = vtanh.pop %v1284
        %v1333 = vtanh.pop %v1287
        %v1334 = vtanh.pop %v1292
        %v1335 = vtanh.pop %v1295
        %v1336 = vtanh.pop %v1300
        %v1337 = vtanh.pop %v1303
        %v1338 = vtanh.pop %v1308
        %v1339 = vtanh.pop %v1311
        %v1340 = vtanh.pop %v1316
        %v1341 = vtanh.pop %v1319
        %v1342 = vtanh.pop %v1324
        %v1343 = vtanh.pop %v1327
        %v1344 = vpack.c.bf16 %v1331, %v1330
        %v1345 = vpack.c.bf16 %v1333, %v1332
        %v1346 = vpack.c.bf16 %v1335, %v1334
        %v1347 = vpack.c.bf16 %v1337, %v1336
        %v1348 = vpack.c.bf16 %v1339, %v1338
        %v1349 = vpack.c.bf16 %v1341, %v1340
        %v1350 = vpack.c.bf16 %v1343, %v1342
        %v1358 = vunpack.c.l.b16 %v1344
        %v1359 = vunpack.c.h.b16 %v1344
        %v1360 = vunpack.c.l.b16 %v1345
        %v1361 = vunpack.c.h.b16 %v1345
        %v1362 = vunpack.c.l.b16 %v1346
        %v1363 = vunpack.c.h.b16 %v1346
        %v1364 = vunpack.c.l.b16 %v1347
        %v1365 = vunpack.c.h.b16 %v1347
        %v1366 = vunpack.c.l.b16 %v1348
        %v1367 = vunpack.c.h.b16 %v1348
        %v1368 = vunpack.c.l.b16 %v1349
        %v1369 = vunpack.c.h.b16 %v1349
        %v1370 = vunpack.c.l.b16 %v1350
        %v1371 = vunpack.c.h.b16 %v1350
        %v1372 = vpack.c.b16 %v1358, %v1358
        %v1373 = vpack.c.b16 %v1359, %v1359
        %v1374 = vpack.c.b16 %v1360, %v1360
        %v1375 = vpack.c.b16 %v1361, %v1361
        %v1376 = vpack.c.b16 %v1362, %v1362
        %v1377 = vpack.c.b16 %v1363, %v1363
        %v1378 = vpack.c.b16 %v1364, %v1364
        %v1379 = vpack.c.b16 %v1365, %v1365
        %v1380 = vpack.c.b16 %v1366, %v1366
        %v1381 = vpack.c.b16 %v1367, %v1367
        %v1382 = vpack.c.b16 %v1368, %v1368
        %v1383 = vpack.c.b16 %v1369, %v1369
        %v1384 = vpack.c.b16 %v1370, %v1370
        %v1385 = vpack.c.b16 %v1371, %v1371
        %1400 = vst [vmem:[%s272] sm:$0xf] %v1372
        %1401 = vst [vmem:[%s272 + $0x4] sm:$0xf] %v1373
        %1402 = vst [vmem:[%s272 + $0x8] sm:$0xf] %v1374
        %1403 = vst [vmem:[%s272 + $0xc] sm:$0xf] %v1375
        %1404 = vst [vmem:[%s272 + $0x10] sm:$0xf] %v1376
        %1405 = vst [vmem:[%s272 + $0x14] sm:$0xf] %v1377
        %1406 = vst [vmem:[%s272 + $0x18] sm:$0xf] %v1378
        %1407 = vst [vmem:[%s272 + $0x1c] sm:$0xf] %v1379
        %1408 = vst [vmem:[%s272 + $0x20] sm:$0xf] %v1380
        %1409 = vst [vmem:[%s272 + $0x24] sm:$0xf] %v1381
        %1410 = vst [vmem:[%s272 + $0x28] sm:$0xf] %v1382
        %1411 = vst [vmem:[%s272 + $0x2c] sm:$0xf] %v1383
        %1412 = vst [vmem:[%s272 + $0x30] sm:$0xf] %v1384
        %1413 = vst [vmem:[%s272 + $0x34] sm:$0xf] %v1385
        %s1414 = sand.u32 %s181, 1
        %s1415 = scalar_lea.sflag [#allocation3], %s1414
        %s1416 = sand.u32 %s181, 1
        %s1417 = smul.addr %s1416, 56
        %s1418 = scalar_lea.vmem [#allocation2], %s1417
        // Predicated region
        $region49: #{tpu_custom_call.1} parent=47 // pred_check
          %p1419 = pneg %p191
        $region50: #{tpu_custom_call.1} parent=47 // pred_check_branch
          %1421 = sbr.rel (%p1419) target = $region52
        $region51: #{tpu_custom_call.1} parent=47 // pred_region
          %s1422 = smul.u32 14, %s21
          %s1424 = ssub.s32 896, 896
          %1425 = vsyncadd %s1415, %s1424
          %s1426 = smul.addr %s1422, 64
          %s1427 = scalar_lea.hbm %s7, %s1426
          %s1428 = sshll.u32 %s1418, 4
          %s1429 = int_to_ptr.vmem [resolvable:$true] %s1428
          %1434 = dma.vmem_to_hbm [thread:$0]  %s1429, 896, %s1427, %s1415, 64, 64, 4
        $region52: #{tpu_custom_call.1} parent=47 // pred_fallthru
          _
      $region48: #{tpu_custom_call.1} parent=5 // pred_fallthru
        _
      %p1435 = scmp.le.s32.totalorder 2, %s16
      // Predicated region
      $region53: #{tpu_custom_call.1} parent=5 // pred_check
        %p1436 = pneg %p1435
      $region54: #{tpu_custom_call.1} parent=5 // pred_check_branch
        %1438 = sbr.rel (%p1436) target = $region56
      $region55: #{tpu_custom_call.1} parent=5 // pred_region
        %s1439 = ssub.s32 %s16, 2
        // Predicated region
        $region57: #{tpu_custom_call.1} parent=55 // pred_check
          %p1440 = pneg %p197
        $region58: #{tpu_custom_call.1} parent=55 // pred_check_branch
          %1442 = sbr.rel (%p1440) target = $region60
        $region59: #{tpu_custom_call.1} parent=55 // pred_region
          %s1443 = sand.u32 %s182, 1
          %s1444 = scalar_lea.sflag [#allocation3], %s1443
          %s1445 = sand.u32 %s182, 1
          %s1446 = smul.addr %s1445, 56
          %s1447 = scalar_lea.vmem [#allocation2], %s1446
          %1448 = dma.done %s1444, 896
        $region60: #{tpu_custom_call.1} parent=55 // pred_fallthru
          _
      $region56: #{tpu_custom_call.1} parent=5 // pred_fallthru
        _
    $region6: #{tpu_custom_call.1} parent=1 // loop_footer
      %s20 = sadd.s32 1, %s16
    $region7: #{tpu_custom_call.1} parent=1 // loop_footer_branch
      %15 = sbr.rel target = $region3
    $region8: #{tpu_custom_call.1} parent=1 // loop_exit
      _
    %1449 = vsyncpa [#allocation3], 1
    %s1450 = scalar_lea.sflag [#allocation3], 1
    %1451 = vsyncpa %s1450, 1

</llo_original>
